<compile_context>
chip_gen: v7x
topology: tpu7x:2x2x1
jax: 0.10.0
libtpu: 0.0.40
codegen_flags: <defaults>
</compile_context>

<pallas_src>
import numpy as np

import jax
import jax.numpy as jnp
from jax.experimental import pallas as pl
from jax.experimental.pallas import tpu as pltpu


def _make_kernel(drop_rate: float, training: bool):
    drop_rate = float(drop_rate)
    apply_dropout = training and drop_rate > 0.0
    full_drop = training and drop_rate >= 1.0
    if apply_dropout and not full_drop:
        # P(bits < thresh) == drop_rate for uniform uint32 bits.  Keep the
        # constant a plain Python int / numpy scalar (NOT a jnp array) so the
        # kernel does not capture a traced constant.
        t = min(int(round(drop_rate * (2.0 ** 32))), 2 ** 32 - 1)
        thresh = t if t < 2 ** 31 else np.uint32(t)
        keep_scale = 1.0 / (1.0 - drop_rate)

    def kernel(seed_ref,                       # scalar prefetch (SMEM)
               x_ref,
               w1_ref, b1_ref, w2_ref, b2_ref, w3_ref, b3_ref,
               w4_ref, b4_ref, w5_ref, b5_ref,
               o_ref):
        tm = x_ref.shape[0]
        hidden = (b1_ref.shape[-1], b2_ref.shape[-1],
                  b3_ref.shape[-1], b4_ref.shape[-1])

        drop_bits = None
        if apply_dropout and not full_drop:
            # Independent stream per (seed, batch tile); draw every layer's
            # bits up front so PRNG generation overlaps the matmul chain.
            pltpu.prng_seed(seed_ref[0], pl.program_id(0))
            drop_bits = []
            for d in hidden:
                bits = pltpu.prng_random_bits((tm, d))
                if bits.dtype != jnp.uint32:
                    bits = pltpu.bitcast(bits, jnp.uint32)
                drop_bits.append(bits)

        def matmul(h, w_ref):
            # bf16 MXU matmul with f32 accumulation.
            return jnp.dot(h.astype(w_ref.dtype), w_ref[...],
                           preferred_element_type=jnp.float32)

        def hidden_layer(h, w_ref, b_ref, li):
            acc = matmul(h, w_ref)
            # Elementwise chain in b_ref.dtype (bf16 on v6e/v7x, f32 on v5e).
            h = acc.astype(b_ref.dtype) + b_ref[...]
            h = jnp.where(h >= 0.0, h, 0.2 * h)          # LeakyReLU(0.2)
            if full_drop:
                h = jnp.zeros_like(h)                    # p == 1.0
            elif apply_dropout:
                keep = drop_bits[li] >= thresh
                h = jnp.where(keep, h * keep_scale, 0.0)
            return h

        h = x_ref[...]                                   # f32; cast in matmul
        h = hidden_layer(h, w1_ref, b1_ref, 0)
        h = hidden_layer(h, w2_ref, b2_ref, 1)
        h = hidden_layer(h, w3_ref, b3_ref, 2)
        h = hidden_layer(h, w4_ref, b4_ref, 3)
        h = matmul(h, w5_ref) + b5_ref[...]              # f32 acc + f32 bias
        o_ref[...] = jnp.maximum(h, 0.0).astype(o_ref.dtype)

    return kernel


def _choose_tm(n, requested=None):
    """Batch tile: multiple of 8, as large as practical (<=2048), a divisor of
    the 8-rounded batch (no pad/slice passes), grid length >= 2 and even."""
    n8 = max(8, ((n + 7) // 8) * 8)
    if requested is not None:
        tm = ((max(8, int(requested)) + 7) // 8) * 8
        return min(tm, n8)
    cap = min(2048, (n8 // 2 // 8) * 8)
    if cap < 8:
        return n8                                        # too small to split
    for require_even in (True, False):
        for tm in range(cap, 7, -8):
            if n8 % tm:
                continue
            if require_even and (n8 // tm) % 2:
                continue
            return tm
    return cap


def _default_elemwise_dtype():
    """bf16 elementwise on chips with a bf16 VPU (v6e/v7x); f32 otherwise."""
    try:
        kind = jax.devices()[0].device_kind.lower()
    except Exception:
        return jnp.bfloat16
    for old in ("v2", "v3", "v4", "v5"):
        if old in kind:
            return jnp.float32
    return jnp.bfloat16


def mlp_4hl_dropout_fr(x, weights, biases, *, drop_rate=0.5, training=False,
                       seed=0, tm=None, elemwise_dtype=None):
    """Fused forward pass of MLP_4HL_Dropout_FR.

    x:       (N, hf_size) float32 (streamed as f32; cast to bf16 in-kernel).
    weights: 5 arrays, W_i as (in_features_i, out_features_i)
             (i.e. PyTorch fc_i.weight transposed).
    biases:  5 arrays, shape (out_features_i,) or (1, out_features_i).
    """
    assert len(weights) == 5 and len(biases) == 5
    N, d_in = x.shape
    dims = [weights[0].shape[0]] + [w.shape[1] for w in weights]
    assert dims[0] == d_in
    d_out = dims[-1]

    if elemwise_dtype is None:
        elemwise_dtype = _default_elemwise_dtype()

    tm = _choose_tm(N, tm)
    n_pad = ((N + tm - 1) // tm) * tm
    x_in = jnp.pad(x, ((0, n_pad - N), (0, 0))) if n_pad != N else x
    x_in = x_in.astype(jnp.float32)
    grid = (n_pad // tm,)

    # Weights go to the MXU in bf16 and stay VMEM-resident (constant index
    # map).  Hidden biases carry the elementwise dtype; the final bias stays
    # f32 (the output epilogue is always f32).
    w_ops = [w.astype(jnp.bfloat16) for w in weights]
    b_ops = [jnp.asarray(b).reshape(1, -1).astype(elemwise_dtype)
             for b in biases[:4]]
    b_ops.append(jnp.asarray(biases[4]).reshape(1, -1).astype(jnp.float32))

    kernel = _make_kernel(float(drop_rate), bool(training))

    def _x_map(i, s):
        return (i, 0)

    def _const(i, s):
        return (0, 0)

    in_specs = [pl.BlockSpec((tm, d_in), _x_map)]
    for w, b in zip(w_ops, b_ops):
        in_specs.append(pl.BlockSpec(w.shape, _const))
        in_specs.append(pl.BlockSpec(b.shape, _const))

    seed_arr = jnp.asarray([seed], dtype=jnp.int32)

    # Advisory cost estimate for XLA's scheduler around the fused call.
    flops = 2 * n_pad * sum(dims[i] * dims[i + 1] for i in range(5))
    bytes_accessed = (n_pad * d_in * 4 + n_pad * d_out * 4
                      + sum(int(np.prod(w.shape)) * 2 for w in w_ops)
                      + sum(int(np.prod(b.shape)) * 4 for b in b_ops))
    cost = pl.CostEstimate(flops=int(flops), transcendentals=0,
                           bytes_accessed=int(bytes_accessed))

    # Only raise the scoped-VMEM limit when the footprint actually needs it
    # (matters on v5e's 16 MiB default if tm / layer widths are scaled up).
    param_bytes = sum(int(np.prod(a.shape)) * a.dtype.itemsize
                      for a in (*w_ops, *b_ops))
    act_bytes = 2 * tm * (d_in + d_out) * 4          # double-buffered x / out
    inter_bytes = 8 * tm * max(dims) * 4             # activations + drop bits
    vmem_est = 2 * param_bytes + act_bytes + inter_bytes
    vmem_limit = (None if vmem_est <= 12 * 2 ** 20
                  else min(2 * vmem_est, 64 * 2 ** 20))

    out = pl.pallas_call(
        kernel,
        out_shape=jax.ShapeDtypeStruct((n_pad, d_out), jnp.float32),
        grid_spec=pltpu.PrefetchScalarGridSpec(
            num_scalar_prefetch=1,
            grid=grid,
            in_specs=in_specs,
            out_specs=pl.BlockSpec((tm, d_out), _x_map),
        ),
        compiler_params=pltpu.CompilerParams(
            dimension_semantics=("parallel",),
            vmem_limit_bytes=vmem_limit,
        ),
        cost_estimate=cost,
    )(seed_arr, x_in, *[a for wb in zip(w_ops, b_ops) for a in wb])

    return out if n_pad == N else out[:N]


def _reference_eval(x, weights, biases, elemwise_dtype):
    """Pure-JAX eval-mode forward mirroring the kernel's dtype path."""
    h = x.astype(jnp.float32)
    for i in range(4):
        acc = jnp.dot(h.astype(jnp.bfloat16), weights[i].astype(jnp.bfloat16),
                      preferred_element_type=jnp.float32)
        b = jnp.asarray(biases[i]).reshape(1, -1).astype(elemwise_dtype)
        h = acc.astype(elemwise_dtype) + b
        h = jnp.where(h >= 0.0, h, 0.2 * h)
    acc = jnp.dot(h.astype(jnp.bfloat16), weights[4].astype(jnp.bfloat16),
                  preferred_element_type=jnp.float32)
    h = acc + jnp.asarray(biases[4]).reshape(1, -1).astype(jnp.float32)
    return jnp.maximum(h, 0.0)


if __name__ == "__main__":
    # Small shapes consistent with the module's opt fields.
    batch = 256
    hf_size, re_hl1, re_hl2, re_hl3, re_hl4, att_size = 64, 64, 64, 32, 32, 16
    drop_rate = 0.3
    dims = [hf_size, re_hl1, re_hl2, re_hl3, re_hl4, att_size]

    key = jax.random.PRNGKey(0)
    kx, *kp = jax.random.split(key, 11)

    x = jax.random.normal(kx, (batch, hf_size), dtype=jnp.float32)
    weights, biases = [], []
    for li in range(5):
        d0, d1 = dims[li], dims[li + 1]
        # weights_init: N(0, 0.02) weights; small random biases for the demo.
        weights.append(jax.random.normal(kp[2 * li], (d0, d1),
                                         dtype=jnp.float32) * 0.02)
        biases.append(jax.random.normal(kp[2 * li + 1], (1, d1),
                                        dtype=jnp.float32) * 0.02)

    ew_dtype = _default_elemwise_dtype()

    # Eval mode (dropout = identity): verify against the pure-JAX reference.
    out_eval = mlp_4hl_dropout_fr(x, weights, biases, drop_rate=drop_rate,
                                  training=False, elemwise_dtype=ew_dtype)
    out_eval = jax.block_until_ready(out_eval)
    ref = _reference_eval(x, weights, biases, ew_dtype)
    assert out_eval.shape == (batch, att_size)
    assert jnp.allclose(out_eval, ref, atol=1e-2, rtol=1e-2), (
        float(jnp.max(jnp.abs(out_eval - ref))))

    # Training mode exercises the in-kernel hardware PRNG; only run it on a
    # real TPU backend (the stateful PRNG primitives need the TPU path).
    if jax.devices()[0].platform == "tpu":
        out_train = mlp_4hl_dropout_fr(x, weights, biases,
                                       drop_rate=drop_rate, training=True,
                                       seed=1234, elemwise_dtype=ew_dtype)
        out_train = jax.block_until_ready(out_train)
        assert out_train.shape == (batch, att_size)
        assert bool(jnp.all(jnp.isfinite(out_train)))
        assert bool(jnp.all(out_train >= 0.0))

    print("KERNEL_OK")
</pallas_src>

<mosaic_0001>
module attributes {stable_mosaic.version = 11 : i64} {
  func.func @kernel(%arg0: i32, %arg1: memref<1xi32, #tpu.memory_space<smem>>, %arg2: memref<128x64xf32, #tpu.memory_space<vmem>>, %arg3: memref<64x64xbf16, #tpu.memory_space<vmem>>, %arg4: memref<1x64xbf16, #tpu.memory_space<vmem>>, %arg5: memref<64x64xbf16, #tpu.memory_space<vmem>>, %arg6: memref<1x64xbf16, #tpu.memory_space<vmem>>, %arg7: memref<64x32xbf16, #tpu.memory_space<vmem>>, %arg8: memref<1x32xbf16, #tpu.memory_space<vmem>>, %arg9: memref<32x32xbf16, #tpu.memory_space<vmem>>, %arg10: memref<1x32xbf16, #tpu.memory_space<vmem>>, %arg11: memref<32x16xbf16, #tpu.memory_space<vmem>>, %arg12: memref<1x16xf32, #tpu.memory_space<vmem>>, %arg13: memref<128x16xf32, #tpu.memory_space<vmem>>) attributes {dimension_semantics = [#tpu.dimension_semantics<parallel>], iteration_bounds = array<i64: 2>, scalar_prefetch = 1 : i64, scratch_operands = 0 : i64, tpu.core_type = #tpu.core_type<tc>, window_params = [{transform_indices = @transform_0, window_bounds = array<i64: 128, 64>}, {pipeline_mode = #tpu.pipeline_mode<synchronous>, transform_indices = @transform_1, window_bounds = array<i64: 64, 64>}, {pipeline_mode = #tpu.pipeline_mode<synchronous>, transform_indices = @transform_2, window_bounds = array<i64: 1, 64>}, {pipeline_mode = #tpu.pipeline_mode<synchronous>, transform_indices = @transform_3, window_bounds = array<i64: 64, 64>}, {pipeline_mode = #tpu.pipeline_mode<synchronous>, transform_indices = @transform_4, window_bounds = array<i64: 1, 64>}, {pipeline_mode = #tpu.pipeline_mode<synchronous>, transform_indices = @transform_5, window_bounds = array<i64: 64, 32>}, {pipeline_mode = #tpu.pipeline_mode<synchronous>, transform_indices = @transform_6, window_bounds = array<i64: 1, 32>}, {pipeline_mode = #tpu.pipeline_mode<synchronous>, transform_indices = @transform_7, window_bounds = array<i64: 32, 32>}, {pipeline_mode = #tpu.pipeline_mode<synchronous>, transform_indices = @transform_8, window_bounds = array<i64: 1, 32>}, {pipeline_mode = #tpu.pipeline_mode<synchronous>, transform_indices = @transform_9, window_bounds = array<i64: 32, 16>}, {pipeline_mode = #tpu.pipeline_mode<synchronous>, transform_indices = @transform_10, window_bounds = array<i64: 1, 16>}, {transform_indices = @transform_11, window_bounds = array<i64: 128, 16>}]} {
    %c0 = arith.constant 0 : index
    %c0_0 = arith.constant 0 : index
    %0 = vector.load %arg2[%c0, %c0_0] : memref<128x64xf32, #tpu.memory_space<vmem>>, vector<128x64xf32>
    %1 = arith.truncf %0 : vector<128x64xf32> to vector<128x64xbf16>
    %c0_1 = arith.constant 0 : index
    %c0_2 = arith.constant 0 : index
    %2 = vector.load %arg3[%c0_1, %c0_2] : memref<64x64xbf16, #tpu.memory_space<vmem>>, vector<64x64xbf16>
    %cst = arith.constant dense<0.000000e+00> : vector<128x64xf32>
    %3 = tpu.matmul %1, %2, %cst {dimension_numbers = #tpu.dot_dimension_numbers<[1], [0], [0], [1], [0, 0, 1, 1], [], []>} : vector<128x64xbf16>, vector<64x64xbf16>, vector<128x64xf32> -> vector<128x64xf32>
    %4 = arith.truncf %3 : vector<128x64xf32> to vector<128x64xbf16>
    %c0_3 = arith.constant 0 : index
    %c0_4 = arith.constant 0 : index
    %5 = vector.load %arg4[%c0_3, %c0_4] : memref<1x64xbf16, #tpu.memory_space<vmem>>, vector<1x64xbf16>
    %6 = vector.broadcast %5 : vector<1x64xbf16> to vector<128x64xbf16>
    %7 = arith.addf %4, %6 : vector<128x64xbf16>
    %cst_5 = arith.constant 0.000000e+00 : bf16
    %8 = vector.broadcast %cst_5 : bf16 to vector<128x64xbf16>
    %9 = arith.cmpf oge, %7, %8 : vector<128x64xbf16>
    %cst_6 = arith.constant 2.001950e-01 : bf16
    %10 = vector.broadcast %cst_6 : bf16 to vector<128x64xbf16>
    %11 = arith.mulf %10, %7 : vector<128x64xbf16>
    %12 = arith.select %9, %7, %11 : vector<128x64xi1>, vector<128x64xbf16>
    %c0_7 = arith.constant 0 : index
    %c0_8 = arith.constant 0 : index
    %13 = vector.load %arg5[%c0_7, %c0_8] : memref<64x64xbf16, #tpu.memory_space<vmem>>, vector<64x64xbf16>
    %cst_9 = arith.constant dense<0.000000e+00> : vector<128x64xf32>
    %14 = tpu.matmul %12, %13, %cst_9 {dimension_numbers = #tpu.dot_dimension_numbers<[1], [0], [0], [1], [0, 0, 1, 1], [], []>} : vector<128x64xbf16>, vector<64x64xbf16>, vector<128x64xf32> -> vector<128x64xf32>
    %15 = arith.truncf %14 : vector<128x64xf32> to vector<128x64xbf16>
    %c0_10 = arith.constant 0 : index
    %c0_11 = arith.constant 0 : index
    %16 = vector.load %arg6[%c0_10, %c0_11] : memref<1x64xbf16, #tpu.memory_space<vmem>>, vector<1x64xbf16>
    %17 = vector.broadcast %16 : vector<1x64xbf16> to vector<128x64xbf16>
    %18 = arith.addf %15, %17 : vector<128x64xbf16>
    %cst_12 = arith.constant 0.000000e+00 : bf16
    %19 = vector.broadcast %cst_12 : bf16 to vector<128x64xbf16>
    %20 = arith.cmpf oge, %18, %19 : vector<128x64xbf16>
    %cst_13 = arith.constant 2.001950e-01 : bf16
    %21 = vector.broadcast %cst_13 : bf16 to vector<128x64xbf16>
    %22 = arith.mulf %21, %18 : vector<128x64xbf16>
    %23 = arith.select %20, %18, %22 : vector<128x64xi1>, vector<128x64xbf16>
    %c0_14 = arith.constant 0 : index
    %c0_15 = arith.constant 0 : index
    %24 = vector.load %arg7[%c0_14, %c0_15] : memref<64x32xbf16, #tpu.memory_space<vmem>>, vector<64x32xbf16>
    %cst_16 = arith.constant dense<0.000000e+00> : vector<128x32xf32>
    %25 = tpu.matmul %23, %24, %cst_16 {dimension_numbers = #tpu.dot_dimension_numbers<[1], [0], [0], [1], [0, 0, 1, 1], [], []>} : vector<128x64xbf16>, vector<64x32xbf16>, vector<128x32xf32> -> vector<128x32xf32>
    %26 = arith.truncf %25 : vector<128x32xf32> to vector<128x32xbf16>
    %c0_17 = arith.constant 0 : index
    %c0_18 = arith.constant 0 : index
    %27 = vector.load %arg8[%c0_17, %c0_18] : memref<1x32xbf16, #tpu.memory_space<vmem>>, vector<1x32xbf16>
    %28 = vector.broadcast %27 : vector<1x32xbf16> to vector<128x32xbf16>
    %29 = arith.addf %26, %28 : vector<128x32xbf16>
    %cst_19 = arith.constant 0.000000e+00 : bf16
    %30 = vector.broadcast %cst_19 : bf16 to vector<128x32xbf16>
    %31 = arith.cmpf oge, %29, %30 : vector<128x32xbf16>
    %cst_20 = arith.constant 2.001950e-01 : bf16
    %32 = vector.broadcast %cst_20 : bf16 to vector<128x32xbf16>
    %33 = arith.mulf %32, %29 : vector<128x32xbf16>
    %34 = arith.select %31, %29, %33 : vector<128x32xi1>, vector<128x32xbf16>
    %c0_21 = arith.constant 0 : index
    %c0_22 = arith.constant 0 : index
    %35 = vector.load %arg9[%c0_21, %c0_22] : memref<32x32xbf16, #tpu.memory_space<vmem>>, vector<32x32xbf16>
    %cst_23 = arith.constant dense<0.000000e+00> : vector<128x32xf32>
    %36 = tpu.matmul %34, %35, %cst_23 {dimension_numbers = #tpu.dot_dimension_numbers<[1], [0], [0], [1], [0, 0, 1, 1], [], []>} : vector<128x32xbf16>, vector<32x32xbf16>, vector<128x32xf32> -> vector<128x32xf32>
    %37 = arith.truncf %36 : vector<128x32xf32> to vector<128x32xbf16>
    %c0_24 = arith.constant 0 : index
    %c0_25 = arith.constant 0 : index
    %38 = vector.load %arg10[%c0_24, %c0_25] : memref<1x32xbf16, #tpu.memory_space<vmem>>, vector<1x32xbf16>
    %39 = vector.broadcast %38 : vector<1x32xbf16> to vector<128x32xbf16>
    %40 = arith.addf %37, %39 : vector<128x32xbf16>
    %cst_26 = arith.constant 0.000000e+00 : bf16
    %41 = vector.broadcast %cst_26 : bf16 to vector<128x32xbf16>
    %42 = arith.cmpf oge, %40, %41 : vector<128x32xbf16>
    %cst_27 = arith.constant 2.001950e-01 : bf16
    %43 = vector.broadcast %cst_27 : bf16 to vector<128x32xbf16>
    %44 = arith.mulf %43, %40 : vector<128x32xbf16>
    %45 = arith.select %42, %40, %44 : vector<128x32xi1>, vector<128x32xbf16>
    %c0_28 = arith.constant 0 : index
    %c0_29 = arith.constant 0 : index
    %46 = vector.load %arg11[%c0_28, %c0_29] : memref<32x16xbf16, #tpu.memory_space<vmem>>, vector<32x16xbf16>
    %cst_30 = arith.constant dense<0.000000e+00> : vector<128x16xf32>
    %47 = tpu.matmul %45, %46, %cst_30 {dimension_numbers = #tpu.dot_dimension_numbers<[1], [0], [0], [1], [0, 0, 1, 1], [], []>} : vector<128x32xbf16>, vector<32x16xbf16>, vector<128x16xf32> -> vector<128x16xf32>
    %c0_31 = arith.constant 0 : index
    %c0_32 = arith.constant 0 : index
    %48 = vector.load %arg12[%c0_31, %c0_32] : memref<1x16xf32, #tpu.memory_space<vmem>>, vector<1x16xf32>
    %49 = vector.broadcast %48 : vector<1x16xf32> to vector<128x16xf32>
    %50 = arith.addf %47, %49 : vector<128x16xf32>
    %cst_33 = arith.constant 0.000000e+00 : f32
    %51 = vector.broadcast %cst_33 : f32 to vector<128x16xf32>
    %52 = arith.maximumf %50, %51 : vector<128x16xf32>
    %c0_34 = arith.constant 0 : index
    %c0_35 = arith.constant 0 : index
    %53 = vector.load %arg13[%c0_34, %c0_35] : memref<128x16xf32, #tpu.memory_space<vmem>>, vector<128x16xf32>
    tpu.vector_store %arg13[%c0_34, %c0_35], %52 {strides = array<i32>} : memref<128x16xf32, #tpu.memory_space<vmem>>, vector<128x16xf32>,
    return
  }
  func.func @transform_0(%arg0: i32, %arg1: memref<1xi32, #tpu.memory_space<smem>>) -> (i32, i32) {
    %c0_i32 = arith.constant 0 : i32
    %c0_i32_0 = arith.constant 0 : i32
    return %arg0, %c0_i32 : i32, i32
  }
  func.func @transform_1(%arg0: i32, %arg1: memref<1xi32, #tpu.memory_space<smem>>) -> (i32, i32) {
    %c0_i32 = arith.constant 0 : i32
    %c0_i32_0 = arith.constant 0 : i32
    %c0_i32_1 = arith.constant 0 : i32
    return %c0_i32, %c0_i32_0 : i32, i32
  }
  func.func @transform_2(%arg0: i32, %arg1: memref<1xi32, #tpu.memory_space<smem>>) -> (i32, i32) {
    %c0_i32 = arith.constant 0 : i32
    %c0_i32_0 = arith.constant 0 : i32
    %c0_i32_1 = arith.constant 0 : i32
    return %c0_i32, %c0_i32_0 : i32, i32
  }
  func.func @transform_3(%arg0: i32, %arg1: memref<1xi32, #tpu.memory_space<smem>>) -> (i32, i32) {
    %c0_i32 = arith.constant 0 : i32
    %c0_i32_0 = arith.constant 0 : i32
    %c0_i32_1 = arith.constant 0 : i32
    return %c0_i32, %c0_i32_0 : i32, i32
  }
  func.func @transform_4(%arg0: i32, %arg1: memref<1xi32, #tpu.memory_space<smem>>) -> (i32, i32) {
    %c0_i32 = arith.constant 0 : i32
    %c0_i32_0 = arith.constant 0 : i32
    %c0_i32_1 = arith.constant 0 : i32
    return %c0_i32, %c0_i32_0 : i32, i32
  }
  func.func @transform_5(%arg0: i32, %arg1: memref<1xi32, #tpu.memory_space<smem>>) -> (i32, i32) {
    %c0_i32 = arith.constant 0 : i32
    %c0_i32_0 = arith.constant 0 : i32
    %c0_i32_1 = arith.constant 0 : i32
    return %c0_i32, %c0_i32_0 : i32, i32
  }
  func.func @transform_6(%arg0: i32, %arg1: memref<1xi32, #tpu.memory_space<smem>>) -> (i32, i32) {
    %c0_i32 = arith.constant 0 : i32
    %c0_i32_0 = arith.constant 0 : i32
    %c0_i32_1 = arith.constant 0 : i32
    return %c0_i32, %c0_i32_0 : i32, i32
  }
  func.func @transform_7(%arg0: i32, %arg1: memref<1xi32, #tpu.memory_space<smem>>) -> (i32, i32) {
    %c0_i32 = arith.constant 0 : i32
    %c0_i32_0 = arith.constant 0 : i32
    %c0_i32_1 = arith.constant 0 : i32
    return %c0_i32, %c0_i32_0 : i32, i32
  }
  func.func @transform_8(%arg0: i32, %arg1: memref<1xi32, #tpu.memory_space<smem>>) -> (i32, i32) {
    %c0_i32 = arith.constant 0 : i32
    %c0_i32_0 = arith.constant 0 : i32
    %c0_i32_1 = arith.constant 0 : i32
    return %c0_i32, %c0_i32_0 : i32, i32
  }
  func.func @transform_9(%arg0: i32, %arg1: memref<1xi32, #tpu.memory_space<smem>>) -> (i32, i32) {
    %c0_i32 = arith.constant 0 : i32
    %c0_i32_0 = arith.constant 0 : i32
    %c0_i32_1 = arith.constant 0 : i32
    return %c0_i32, %c0_i32_0 : i32, i32
  }
  func.func @transform_10(%arg0: i32, %arg1: memref<1xi32, #tpu.memory_space<smem>>) -> (i32, i32) {
    %c0_i32 = arith.constant 0 : i32
    %c0_i32_0 = arith.constant 0 : i32
    %c0_i32_1 = arith.constant 0 : i32
    return %c0_i32, %c0_i32_0 : i32, i32
  }
  func.func @transform_11(%arg0: i32, %arg1: memref<1xi32, #tpu.memory_space<smem>>) -> (i32, i32) {
    %c0_i32 = arith.constant 0 : i32
    %c0_i32_0 = arith.constant 0 : i32
    return %arg0, %c0_i32 : i32, i32
  }
}

</mosaic_0001>

<llo_original>
// kernel: tpu_custom_call.1
$region0: #{tpu_custom_call.1}
  #allocation0 [shape = 'u32[]', space=smem, size = 0x4, offset = 0x4, fixed_abs, tag = 'smem constant byte address 0x4 - core index']
  #allocation1 [shape = 'u32[144,128]{1,0:T(1,128)}', space=vmem, size = 0x12000, scoped, tag = 'internal scratch']
  #allocation2 [shape = 's32[1]{0}', space=sflag, size = 0x4, scoped, tag = 'scoped memory for tpu_custom_call.1']
  #allocation3 [shape = 's32[1]{0:T(128)S(6)}', space=smem, size = 0x200, scoped, tag = 'prefetched SMEM operand 0']
  %s0 = inlined_call_operand.<no memory space> [shape: s32[1], index: 0, kind: input, shape index: {}]
  %s1 = inlined_call_operand.vmem [shape: f32[256,64], index: 1, kind: input, shape index: {}]
  %s2 = inlined_call_operand.vmem [shape: bf16[64,64], index: 2, kind: input, shape index: {}]
  %s3 = inlined_call_operand.vmem [shape: bf16[1,64], index: 3, kind: input, shape index: {}]
  %s4 = inlined_call_operand.vmem [shape: bf16[64,64], index: 4, kind: input, shape index: {}]
  %s5 = inlined_call_operand.vmem [shape: bf16[1,64], index: 5, kind: input, shape index: {}]
  %s6 = inlined_call_operand.vmem [shape: bf16[64,32], index: 6, kind: input, shape index: {}]
  %s7 = inlined_call_operand.vmem [shape: bf16[1,32], index: 7, kind: input, shape index: {}]
  %s8 = inlined_call_operand.vmem [shape: bf16[32,32], index: 8, kind: input, shape index: {}]
  %s9 = inlined_call_operand.vmem [shape: bf16[1,32], index: 9, kind: input, shape index: {}]
  %s10 = inlined_call_operand.vmem [shape: bf16[32,16], index: 10, kind: input, shape index: {}]
  %s11 = inlined_call_operand.vmem [shape: f32[1,16], index: 11, kind: input, shape index: {}]
  %s12 = inlined_call_operand.vmem [shape: f32[256,16], index: 12, kind: output, shape index: {}]
  %s13 = sld [smem:[#allocation0]]
  $region77: #{tpu_custom_call.1} parent=0
    _
  %s15 = ssub.s32 1, %s13
  %s16 = scalar_select 0, %s15, %s13
  %17 = sst [smem:[#allocation3]] %s0
  loop: start=0, step=1, limit=4
  $region2: #{tpu_custom_call.1} parent=0 // loop_pre_header
    _
  $region3: #{tpu_custom_call.1} parent=0 // loop_header
    %s19 = sphi 0, %s23
    %p20 = scmp.ge.s32.totalorder %s19, 4
    %s29 = sphi 0, %s31
    %s32 = sphi 0, %s29
    %s33 = sphi 0, %s32
    %s49 = sphi 0, %s33
    %s53 = sphi 0, %s53
    %s55 = sphi 0, %s53
    %s56 = sphi 0, %s55
    %s70 = sphi 0, %s56
    %s74 = sphi 0, %s74
    %s76 = sphi 0, %s74
    %s77 = sphi 0, %s76
    %s91 = sphi 0, %s77
    %s95 = sphi 0, %s95
    %s97 = sphi 0, %s95
    %s98 = sphi 0, %s97
    %s112 = sphi 0, %s98
    %s116 = sphi 0, %s116
    %s118 = sphi 0, %s116
    %s119 = sphi 0, %s118
    %s133 = sphi 0, %s119
    %s137 = sphi 0, %s137
    %s139 = sphi 0, %s137
    %s140 = sphi 0, %s139
    %s154 = sphi 0, %s140
    %s158 = sphi 0, %s158
    %s160 = sphi 0, %s158
    %s161 = sphi 0, %s160
    %s175 = sphi 0, %s161
    %s179 = sphi 0, %s179
    %s181 = sphi 0, %s179
    %s182 = sphi 0, %s181
    %s196 = sphi 0, %s182
    %s200 = sphi 0, %s200
    %s202 = sphi 0, %s200
    %s203 = sphi 0, %s202
    %s217 = sphi 0, %s203
    %s221 = sphi 0, %s221
    %s223 = sphi 0, %s221
    %s224 = sphi 0, %s223
    %s238 = sphi 0, %s224
    %s242 = sphi 0, %s242
    %s244 = sphi 0, %s242
    %s245 = sphi 0, %s244
    %s259 = sphi 0, %s245
    %s265 = sphi 0, %s267
    %s268 = sphi 0, %s265
    %s269 = sphi 0, %s268
    %s285 = sphi 0, %s269
  $region4: #{tpu_custom_call.1} parent=0 // loop_header_branch
    %22 = sbr.rel (%p20) target = $region8
  $region5: #{tpu_custom_call.1} parent=0 // loop_body
    %s24 = ssub.s32 %s19, 1
    %s25 = ssub.s32 %s19, 2
    %s26 = sadd.s32 %s19, 1
    %s27 = ssub.s32 %s19, %s26
    %p28 = scmp.eq.s32.totalorder %s27, 0
    %s30 = sadd.s32 %s29, 1
    %s31 = scalar_select %p28, %s29, %s30
    %p34 = pneg %p28
    %p35 = scmp.eq.s32.totalorder %s19, 1
    %p36 = por %p34, %p35
    %p37 = scmp.ne.s32.totalorder %s29, %s32
    %p38 = scmp.eq.s32.totalorder %s19, 0
    %p39 = por %p37, %p38
    %p40 = scmp.ne.s32.totalorder %s29, %s32
    %p41 = scmp.eq.s32.totalorder %s24, 1
    %p42 = por %p40, %p41
    %p43 = scmp.ne.s32.totalorder %s32, %s33
    %p44 = scmp.eq.s32.totalorder %s24, 0
    %p45 = por %p43, %p44
    %p46 = scmp.ne.s32.totalorder %s32, %s33
    %p47 = scmp.eq.s32.totalorder %s25, 1
    %p48 = por %p46, %p47
    %p50 = scmp.ne.s32.totalorder %s33, %s49
    %p51 = scmp.eq.s32.totalorder %s25, 0
    %p52 = por %p50, %p51
    %s54 = sadd.s32 %s53, 1
    %p57 = scmp.eq.s32.totalorder %s19, 1
    %p58 = scmp.ne.s32.totalorder %s53, %s55
    %p59 = scmp.eq.s32.totalorder %s19, 0
    %p60 = por %p58, %p59
    %p61 = scmp.ne.s32.totalorder %s53, %s55
    %p62 = scmp.eq.s32.totalorder %s24, 1
    %p63 = por %p61, %p62
    %p64 = scmp.ne.s32.totalorder %s55, %s56
    %p65 = scmp.eq.s32.totalorder %s24, 0
    %p66 = por %p64, %p65
    %p67 = scmp.ne.s32.totalorder %s55, %s56
    %p68 = scmp.eq.s32.totalorder %s25, 1
    %p69 = por %p67, %p68
    %p71 = scmp.ne.s32.totalorder %s56, %s70
    %p72 = scmp.eq.s32.totalorder %s25, 0
    %p73 = por %p71, %p72
    %s75 = sadd.s32 %s74, 1
    %p78 = scmp.eq.s32.totalorder %s19, 1
    %p79 = scmp.ne.s32.totalorder %s74, %s76
    %p80 = scmp.eq.s32.totalorder %s19, 0
    %p81 = por %p79, %p80
    %p82 = scmp.ne.s32.totalorder %s74, %s76
    %p83 = scmp.eq.s32.totalorder %s24, 1
    %p84 = por %p82, %p83
    %p85 = scmp.ne.s32.totalorder %s76, %s77
    %p86 = scmp.eq.s32.totalorder %s24, 0
    %p87 = por %p85, %p86
    %p88 = scmp.ne.s32.totalorder %s76, %s77
    %p89 = scmp.eq.s32.totalorder %s25, 1
    %p90 = por %p88, %p89
    %p92 = scmp.ne.s32.totalorder %s77, %s91
    %p93 = scmp.eq.s32.totalorder %s25, 0
    %p94 = por %p92, %p93
    %s96 = sadd.s32 %s95, 1
    %p99 = scmp.eq.s32.totalorder %s19, 1
    %p100 = scmp.ne.s32.totalorder %s95, %s97
    %p101 = scmp.eq.s32.totalorder %s19, 0
    %p102 = por %p100, %p101
    %p103 = scmp.ne.s32.totalorder %s95, %s97
    %p104 = scmp.eq.s32.totalorder %s24, 1
    %p105 = por %p103, %p104
    %p106 = scmp.ne.s32.totalorder %s97, %s98
    %p107 = scmp.eq.s32.totalorder %s24, 0
    %p108 = por %p106, %p107
    %p109 = scmp.ne.s32.totalorder %s97, %s98
    %p110 = scmp.eq.s32.totalorder %s25, 1
    %p111 = por %p109, %p110
    %p113 = scmp.ne.s32.totalorder %s98, %s112
    %p114 = scmp.eq.s32.totalorder %s25, 0
    %p115 = por %p113, %p114
    %s117 = sadd.s32 %s116, 1
    %p120 = scmp.eq.s32.totalorder %s19, 1
    %p121 = scmp.ne.s32.totalorder %s116, %s118
    %p122 = scmp.eq.s32.totalorder %s19, 0
    %p123 = por %p121, %p122
    %p124 = scmp.ne.s32.totalorder %s116, %s118
    %p125 = scmp.eq.s32.totalorder %s24, 1
    %p126 = por %p124, %p125
    %p127 = scmp.ne.s32.totalorder %s118, %s119
    %p128 = scmp.eq.s32.totalorder %s24, 0
    %p129 = por %p127, %p128
    %p130 = scmp.ne.s32.totalorder %s118, %s119
    %p131 = scmp.eq.s32.totalorder %s25, 1
    %p132 = por %p130, %p131
    %p134 = scmp.ne.s32.totalorder %s119, %s133
    %p135 = scmp.eq.s32.totalorder %s25, 0
    %p136 = por %p134, %p135
    %s138 = sadd.s32 %s137, 1
    %p141 = scmp.eq.s32.totalorder %s19, 1
    %p142 = scmp.ne.s32.totalorder %s137, %s139
    %p143 = scmp.eq.s32.totalorder %s19, 0
    %p144 = por %p142, %p143
    %p145 = scmp.ne.s32.totalorder %s137, %s139
    %p146 = scmp.eq.s32.totalorder %s24, 1
    %p147 = por %p145, %p146
    %p148 = scmp.ne.s32.totalorder %s139, %s140
    %p149 = scmp.eq.s32.totalorder %s24, 0
    %p150 = por %p148, %p149
    %p151 = scmp.ne.s32.totalorder %s139, %s140
    %p152 = scmp.eq.s32.totalorder %s25, 1
    %p153 = por %p151, %p152
    %p155 = scmp.ne.s32.totalorder %s140, %s154
    %p156 = scmp.eq.s32.totalorder %s25, 0
    %p157 = por %p155, %p156
    %s159 = sadd.s32 %s158, 1
    %p162 = scmp.eq.s32.totalorder %s19, 1
    %p163 = scmp.ne.s32.totalorder %s158, %s160
    %p164 = scmp.eq.s32.totalorder %s19, 0
    %p165 = por %p163, %p164
    %p166 = scmp.ne.s32.totalorder %s158, %s160
    %p167 = scmp.eq.s32.totalorder %s24, 1
    %p168 = por %p166, %p167
    %p169 = scmp.ne.s32.totalorder %s160, %s161
    %p170 = scmp.eq.s32.totalorder %s24, 0
    %p171 = por %p169, %p170
    %p172 = scmp.ne.s32.totalorder %s160, %s161
    %p173 = scmp.eq.s32.totalorder %s25, 1
    %p174 = por %p172, %p173
    %p176 = scmp.ne.s32.totalorder %s161, %s175
    %p177 = scmp.eq.s32.totalorder %s25, 0
    %p178 = por %p176, %p177
    %s180 = sadd.s32 %s179, 1
    %p183 = scmp.eq.s32.totalorder %s19, 1
    %p184 = scmp.ne.s32.totalorder %s179, %s181
    %p185 = scmp.eq.s32.totalorder %s19, 0
    %p186 = por %p184, %p185
    %p187 = scmp.ne.s32.totalorder %s179, %s181
    %p188 = scmp.eq.s32.totalorder %s24, 1
    %p189 = por %p187, %p188
    %p190 = scmp.ne.s32.totalorder %s181, %s182
    %p191 = scmp.eq.s32.totalorder %s24, 0
    %p192 = por %p190, %p191
    %p193 = scmp.ne.s32.totalorder %s181, %s182
    %p194 = scmp.eq.s32.totalorder %s25, 1
    %p195 = por %p193, %p194
    %p197 = scmp.ne.s32.totalorder %s182, %s196
    %p198 = scmp.eq.s32.totalorder %s25, 0
    %p199 = por %p197, %p198
    %s201 = sadd.s32 %s200, 1
    %p204 = scmp.eq.s32.totalorder %s19, 1
    %p205 = scmp.ne.s32.totalorder %s200, %s202
    %p206 = scmp.eq.s32.totalorder %s19, 0
    %p207 = por %p205, %p206
    %p208 = scmp.ne.s32.totalorder %s200, %s202
    %p209 = scmp.eq.s32.totalorder %s24, 1
    %p210 = por %p208, %p209
    %p211 = scmp.ne.s32.totalorder %s202, %s203
    %p212 = scmp.eq.s32.totalorder %s24, 0
    %p213 = por %p211, %p212
    %p214 = scmp.ne.s32.totalorder %s202, %s203
    %p215 = scmp.eq.s32.totalorder %s25, 1
    %p216 = por %p214, %p215
    %p218 = scmp.ne.s32.totalorder %s203, %s217
    %p219 = scmp.eq.s32.totalorder %s25, 0
    %p220 = por %p218, %p219
    %s222 = sadd.s32 %s221, 1
    %p225 = scmp.eq.s32.totalorder %s19, 1
    %p226 = scmp.ne.s32.totalorder %s221, %s223
    %p227 = scmp.eq.s32.totalorder %s19, 0
    %p228 = por %p226, %p227
    %p229 = scmp.ne.s32.totalorder %s221, %s223
    %p230 = scmp.eq.s32.totalorder %s24, 1
    %p231 = por %p229, %p230
    %p232 = scmp.ne.s32.totalorder %s223, %s224
    %p233 = scmp.eq.s32.totalorder %s24, 0
    %p234 = por %p232, %p233
    %p235 = scmp.ne.s32.totalorder %s223, %s224
    %p236 = scmp.eq.s32.totalorder %s25, 1
    %p237 = por %p235, %p236
    %p239 = scmp.ne.s32.totalorder %s224, %s238
    %p240 = scmp.eq.s32.totalorder %s25, 0
    %p241 = por %p239, %p240
    %s243 = sadd.s32 %s242, 1
    %p246 = scmp.eq.s32.totalorder %s19, 1
    %p247 = scmp.ne.s32.totalorder %s242, %s244
    %p248 = scmp.eq.s32.totalorder %s19, 0
    %p249 = por %p247, %p248
    %p250 = scmp.ne.s32.totalorder %s242, %s244
    %p251 = scmp.eq.s32.totalorder %s24, 1
    %p252 = por %p250, %p251
    %p253 = scmp.ne.s32.totalorder %s244, %s245
    %p254 = scmp.eq.s32.totalorder %s24, 0
    %p255 = por %p253, %p254
    %p256 = scmp.ne.s32.totalorder %s244, %s245
    %p257 = scmp.eq.s32.totalorder %s25, 1
    %p258 = por %p256, %p257
    %p260 = scmp.ne.s32.totalorder %s245, %s259
    %p261 = scmp.eq.s32.totalorder %s25, 0
    %p262 = por %p260, %p261
    %s263 = ssub.s32 %s19, %s26
    %p264 = scmp.eq.s32.totalorder %s263, 0
    %s266 = sadd.s32 %s265, 1
    %s267 = scalar_select %p264, %s265, %s266
    %p270 = pneg %p264
    %p271 = scmp.eq.s32.totalorder %s19, 1
    %p272 = por %p270, %p271
    %p273 = scmp.ne.s32.totalorder %s265, %s268
    %p274 = scmp.eq.s32.totalorder %s19, 0
    %p275 = por %p273, %p274
    %p276 = scmp.ne.s32.totalorder %s265, %s268
    %p277 = scmp.eq.s32.totalorder %s24, 1
    %p278 = por %p276, %p277
    %p279 = scmp.ne.s32.totalorder %s268, %s269
    %p280 = scmp.eq.s32.totalorder %s24, 0
    %p281 = por %p279, %p280
    %p282 = scmp.ne.s32.totalorder %s268, %s269
    %p283 = scmp.eq.s32.totalorder %s25, 1
    %p284 = por %p282, %p283
    %p286 = scmp.ne.s32.totalorder %s269, %s285
    %p287 = scmp.eq.s32.totalorder %s25, 0
    %p288 = por %p286, %p287
    %p289 = scmp.le.s32.totalorder 1, %s19
    %p290 = scmp.lt.s32.totalorder %s19, 3
    %p291 = pnand %p289, %p290
    %p292 = pneg %p291
    // Predicated region
    $region9: #{tpu_custom_call.1} parent=5 // pred_check
      _
    $region10: #{tpu_custom_call.1} parent=5 // pred_check_branch
      %294 = sbr.rel (%p291) target = $region12
    $region11: #{tpu_custom_call.1} parent=5 // pred_region
      %s295 = ssub.s32 %s19, 1
      // Predicated region
      $region13: #{tpu_custom_call.1} parent=11 // pred_check
        %p296 = pneg %p66
      $region14: #{tpu_custom_call.1} parent=11 // pred_check_branch
        %298 = sbr.rel (%p296) target = $region16
      $region15: #{tpu_custom_call.1} parent=11 // pred_region
        _
      $region16: #{tpu_custom_call.1} parent=11 // pred_fallthru
        _
      // Predicated region
      $region17: #{tpu_custom_call.1} parent=11 // pred_check
        %p299 = pneg %p87
      $region18: #{tpu_custom_call.1} parent=11 // pred_check_branch
        %301 = sbr.rel (%p299) target = $region20
      $region19: #{tpu_custom_call.1} parent=11 // pred_region
        _
      $region20: #{tpu_custom_call.1} parent=11 // pred_fallthru
        _
      // Predicated region
      $region21: #{tpu_custom_call.1} parent=11 // pred_check
        %p302 = pneg %p108
      $region22: #{tpu_custom_call.1} parent=11 // pred_check_branch
        %304 = sbr.rel (%p302) target = $region24
      $region23: #{tpu_custom_call.1} parent=11 // pred_region
        _
      $region24: #{tpu_custom_call.1} parent=11 // pred_fallthru
        _
      // Predicated region
      $region25: #{tpu_custom_call.1} parent=11 // pred_check
        %p305 = pneg %p129
      $region26: #{tpu_custom_call.1} parent=11 // pred_check_branch
        %307 = sbr.rel (%p305) target = $region28
      $region27: #{tpu_custom_call.1} parent=11 // pred_region
        _
      $region28: #{tpu_custom_call.1} parent=11 // pred_fallthru
        _
      // Predicated region
      $region29: #{tpu_custom_call.1} parent=11 // pred_check
        %p308 = pneg %p150
      $region30: #{tpu_custom_call.1} parent=11 // pred_check_branch
        %310 = sbr.rel (%p308) target = $region32
      $region31: #{tpu_custom_call.1} parent=11 // pred_region
        _
      $region32: #{tpu_custom_call.1} parent=11 // pred_fallthru
        _
      // Predicated region
      $region33: #{tpu_custom_call.1} parent=11 // pred_check
        %p311 = pneg %p171
      $region34: #{tpu_custom_call.1} parent=11 // pred_check_branch
        %313 = sbr.rel (%p311) target = $region36
      $region35: #{tpu_custom_call.1} parent=11 // pred_region
        _
      $region36: #{tpu_custom_call.1} parent=11 // pred_fallthru
        _
      // Predicated region
      $region37: #{tpu_custom_call.1} parent=11 // pred_check
        %p314 = pneg %p192
      $region38: #{tpu_custom_call.1} parent=11 // pred_check_branch
        %316 = sbr.rel (%p314) target = $region40
      $region39: #{tpu_custom_call.1} parent=11 // pred_region
        _
      $region40: #{tpu_custom_call.1} parent=11 // pred_fallthru
        _
      // Predicated region
      $region41: #{tpu_custom_call.1} parent=11 // pred_check
        %p317 = pneg %p213
      $region42: #{tpu_custom_call.1} parent=11 // pred_check_branch
        %319 = sbr.rel (%p317) target = $region44
      $region43: #{tpu_custom_call.1} parent=11 // pred_region
        _
      $region44: #{tpu_custom_call.1} parent=11 // pred_fallthru
        _
      // Predicated region
      $region45: #{tpu_custom_call.1} parent=11 // pred_check
        %p320 = pneg %p234
      $region46: #{tpu_custom_call.1} parent=11 // pred_check_branch
        %322 = sbr.rel (%p320) target = $region48
      $region47: #{tpu_custom_call.1} parent=11 // pred_region
        _
      $region48: #{tpu_custom_call.1} parent=11 // pred_fallthru
        _
      // Predicated region
      $region49: #{tpu_custom_call.1} parent=11 // pred_check
        %p323 = pneg %p255
      $region50: #{tpu_custom_call.1} parent=11 // pred_check_branch
        %325 = sbr.rel (%p323) target = $region52
      $region51: #{tpu_custom_call.1} parent=11 // pred_region
        _
      $region52: #{tpu_custom_call.1} parent=11 // pred_fallthru
        _
    $region12: #{tpu_custom_call.1} parent=5 // pred_fallthru
      _
    %p326 = scmp.lt.s32.totalorder %s19, 2
    // Predicated region
    $region53: #{tpu_custom_call.1} parent=5 // pred_check
      %p327 = pneg %p326
    $region54: #{tpu_custom_call.1} parent=5 // pred_check_branch
      %329 = sbr.rel (%p327) target = $region56
    $region55: #{tpu_custom_call.1} parent=5 // pred_region
      // Predicated region
      $region57: #{tpu_custom_call.1} parent=55 // pred_check
        %p330 = pneg %p39
      $region58: #{tpu_custom_call.1} parent=55 // pred_check_branch
        %332 = sbr.rel (%p330) target = $region60
      $region59: #{tpu_custom_call.1} parent=55 // pred_region
        %s333 = smul.u32 16, %s19
        %p334 = scmp.lt.s32.totalorder %s333, 31
        %s335 = scalar_select %p334, %s333, 31
        %s336 = smul.addr %s335, 8
        %s337 = scalar_lea.vmem %s1, %s336
        %s338 = smul.u32 16, %s19
      $region60: #{tpu_custom_call.1} parent=55 // pred_fallthru
        _
    $region56: #{tpu_custom_call.1} parent=5 // pred_fallthru
      _
    %p339 = scmp.le.s32.totalorder 1, %s19
    %p340 = scmp.lt.s32.totalorder %s19, 3
    %p341 = pnand %p339, %p340
    %p342 = pneg %p341
    // Predicated region
    $region61: #{tpu_custom_call.1} parent=5 // pred_check
      _
    $region62: #{tpu_custom_call.1} parent=5 // pred_check_branch
      %344 = sbr.rel (%p341) target = $region64
    $region63: #{tpu_custom_call.1} parent=5 // pred_region
      %s345 = ssub.s32 %s19, 1
      %s346 = smul.u32 16, %s24
      %p347 = scmp.lt.s32.totalorder %s346, 31
      %s348 = scalar_select %p347, %s346, 31
      %s349 = smul.addr %s348, 8
      %s350 = scalar_lea.vmem %s1, %s349
      %p351 = pneg %p45
      %p352 = pneg %p42
      %p353 = pneg %p66
      %p354 = pneg %p63
      %p355 = pneg %p87
      %p356 = pneg %p84
      %p357 = pneg %p108
      %p358 = pneg %p105
      %p359 = pneg %p129
      %p360 = pneg %p126
      %p361 = pneg %p150
      %p362 = pneg %p147
      %p363 = pneg %p171
      %p364 = pneg %p168
      %p365 = pneg %p192
      %p366 = pneg %p189
      %p367 = pneg %p213
      %p368 = pneg %p210
      %p369 = pneg %p234
      %p370 = pneg %p231
      %p371 = pneg %p255
      %p372 = pneg %p252
      %p373 = pneg %p281
      %p374 = pneg %p278
      %s375 = smul.u32 16, %s24
      %p376 = scmp.lt.s32.totalorder %s375, 31
      %s377 = scalar_select %p376, %s375, 31
      %s378 = smul.addr %s377, 8
      %s379 = scalar_lea.vmem %s12, %s378
      %s380 = smul.u32 16, %s24
      %p381 = scmp.lt.s32.totalorder %s380, 31
      %s382 = scalar_select %p381, %s380, 31
      %s383 = smul.addr %s382, 8
      %s384 = scalar_lea.vmem %s1, %s383
      %s385 = smul.u32 16, %s24
      %s386 = smul.u32 16, %s24
      %p387 = scmp.lt.s32.totalorder %s386, 31
      %s388 = scalar_select %p387, %s386, 31
      %s389 = smul.addr %s388, 8
      %s390 = scalar_lea.vmem %s12, %s389
      %s391 = smul.u32 16, %s24
      %v394 = vld [vmem:[%s384] sm:$0xff]
      %v395 = vld [vmem:[%s384 + $0x8] sm:$0xff]
      %v396 = vld [vmem:[%s384 + $0x10] sm:$0xff]
      %v397 = vld [vmem:[%s384 + $0x18] sm:$0xff]
      %v398 = vld [vmem:[%s384 + $0x20] sm:$0xff]
      %v399 = vld [vmem:[%s384 + $0x28] sm:$0xff]
      %v400 = vld [vmem:[%s384 + $0x30] sm:$0xff]
      %v401 = vld [vmem:[%s384 + $0x38] sm:$0xff]
      %v402 = vld [vmem:[%s384 + $0x40] sm:$0xff]
      %v403 = vld [vmem:[%s384 + $0x48] sm:$0xff]
      %v404 = vld [vmem:[%s384 + $0x50] sm:$0xff]
      %v405 = vld [vmem:[%s384 + $0x58] sm:$0xff]
      %v406 = vld [vmem:[%s384 + $0x60] sm:$0xff]
      %v407 = vld [vmem:[%s384 + $0x68] sm:$0xff]
      %v408 = vld [vmem:[%s384 + $0x70] sm:$0xff]
      %v409 = vld [vmem:[%s384 + $0x78] sm:$0xff]
      %v410 = vpack.c.bf16 %v395, %v394
      %v411 = vpack.c.bf16 %v397, %v396
      %v412 = vpack.c.bf16 %v399, %v398
      %v413 = vpack.c.bf16 %v401, %v400
      %v414 = vpack.c.bf16 %v403, %v402
      %v415 = vpack.c.bf16 %v405, %v404
      %v416 = vpack.c.bf16 %v407, %v406
      %v417 = vpack.c.bf16 %v409, %v408
      %v418 = vld [vmem:[%s2] sm:$0xf]
      %v419 = vld [vmem:[%s2 + $0x4] sm:$0xf]
      %v420 = vld [vmem:[%s2 + $0x8] sm:$0xf]
      %v421 = vld [vmem:[%s2 + $0xc] sm:$0xf]
      %v422 = vld [vmem:[%s2 + $0x10] sm:$0xf]
      %v423 = vld [vmem:[%s2 + $0x14] sm:$0xf]
      %v424 = vld [vmem:[%s2 + $0x18] sm:$0xf]
      %v425 = vld [vmem:[%s2 + $0x1c] sm:$0xf]
      %v434 = vunpack.c.l.b16 %v418
      %v435 = vunpack.c.l.b16 %v419
      %v436 = vunpack.c.l.b16 %v420
      %v437 = vunpack.c.l.b16 %v421
      %v438 = vunpack.c.l.b16 %v422
      %v439 = vunpack.c.l.b16 %v423
      %v440 = vunpack.c.l.b16 %v424
      %v441 = vunpack.c.l.b16 %v425
      %v442 = vpack.c.b16 %v435, %v434
      %v443 = vpack.c.b16 %v437, %v436
      %v444 = vpack.c.b16 %v439, %v438
      %v445 = vpack.c.b16 %v441, %v440
      %vm450 = vcmask 523264
      %v452 = vsel %vm450, %v410, 0
      %v455 = vsel %vm450, %v411, 0
      %v458 = vsel %vm450, %v412, 0
      %v461 = vsel %vm450, %v413, 0
      %v464 = vsel %vm450, %v414, 0
      %v467 = vsel %vm450, %v415, 0
      %v470 = vsel %vm450, %v416, 0
      %v473 = vsel %vm450, %v417, 0
      %475 = vmatprep.subr.bf16.mxu0 0
      %476 = vmatpush1.bf16.msra.mxu0 %v442
      %477 = vmatprep.subr.bf16.mxu0 0
      %478 = vmatpush1.bf16.msra.mxu0 %v443
      %479 = vmatprep.subr.bf16.mxu0 0
      %480 = vmatpush1.bf16.msra.mxu0 %v444
      %481 = vmatprep.subr.bf16.mxu0 0
      %482 = vmatpush1.bf16.msra.mxu0 %v445
      %483 = vmatprep.subr.bf16.mxu0 0
      %484 = vmatpush1.bf16.msra.mxu0 0
      %485 = vmatprep.subr.bf16.mxu0 0
      %486 = vmatpush1.bf16.msra.mxu0 0
      %487 = vmatprep.subr.bf16.mxu0 0
      %488 = vmatpush1.bf16.msra.mxu0 0
      %489 = vmatprep.subr.bf16.mxu0 0
      %490 = vmatpush1.bf16.msra.mxu0 0
      %491 = vmatprep.subr.bf16.mxu0 0
      %492 = vmatpush1.bf16.msra.mxu0 0
      %493 = vmatprep.subr.bf16.mxu0 0
      %494 = vmatpush1.bf16.msra.mxu0 0
      %495 = vmatprep.subr.bf16.mxu0 0
      %496 = vmatpush1.bf16.msra.mxu0 0
      %497 = vmatprep.subr.bf16.mxu0 0
      %498 = vmatpush1.bf16.msra.mxu0 0
      %499 = vmatprep.subr.bf16.mxu0 0
      %500 = vmatpush1.bf16.msra.mxu0 0
      %501 = vmatprep.subr.bf16.mxu0 0
      %502 = vmatpush1.bf16.msra.mxu0 0
      %503 = vmatprep.subr.bf16.mxu0 0
      %504 = vmatpush1.bf16.msra.mxu0 0
      %505 = vmatprep.subr.bf16.mxu0 0
      %506 = vmatpush1.bf16.msra.mxu0 0
      %507 = vmatprep.mubr.bf16.mxu0 0
      %508 = vmatmul.mubr.bf16.gmra.mrb[0].mxu0 %v452
      %v509 = vpop.f32.mrb[0].mxu0
      %v510 = vadd.f32 0.0, %v509
      %v511 = vpop.f32.mrb[0].mxu0
      %v512 = vpop.f32.mrb[0].mxu0
      %v513 = vadd.f32 0.0, %v512
      %v514 = vpop.f32.mrb[0].mxu0
      %515 = vmatprep.mubr.bf16.mxu0 0
      %516 = vmatmul.mubr.bf16.gmra.mrb[0].mxu0 %v455
      %v517 = vpop.f32.mrb[0].mxu0
      %v518 = vadd.f32 0.0, %v517
      %v519 = vpop.f32.mrb[0].mxu0
      %v520 = vpop.f32.mrb[0].mxu0
      %v521 = vadd.f32 0.0, %v520
      %v522 = vpop.f32.mrb[0].mxu0
      %523 = vmatprep.mubr.bf16.mxu0 0
      %524 = vmatmul.mubr.bf16.gmra.mrb[0].mxu0 %v458
      %v525 = vpop.f32.mrb[0].mxu0
      %v526 = vadd.f32 0.0, %v525
      %v527 = vpop.f32.mrb[0].mxu0
      %v528 = vpop.f32.mrb[0].mxu0
      %v529 = vadd.f32 0.0, %v528
      %v530 = vpop.f32.mrb[0].mxu0
      %531 = vmatprep.mubr.bf16.mxu0 0
      %532 = vmatmul.mubr.bf16.gmra.mrb[0].mxu0 %v461
      %v533 = vpop.f32.mrb[0].mxu0
      %v534 = vadd.f32 0.0, %v533
      %v535 = vpop.f32.mrb[0].mxu0
      %v536 = vpop.f32.mrb[0].mxu0
      %v537 = vadd.f32 0.0, %v536
      %v538 = vpop.f32.mrb[0].mxu0
      %539 = vmatprep.mubr.bf16.mxu0 0
      %540 = vmatmul.mubr.bf16.gmra.mrb[0].mxu0 %v464
      %v541 = vpop.f32.mrb[0].mxu0
      %v542 = vadd.f32 0.0, %v541
      %v543 = vpop.f32.mrb[0].mxu0
      %v544 = vpop.f32.mrb[0].mxu0
      %v545 = vadd.f32 0.0, %v544
      %v546 = vpop.f32.mrb[0].mxu0
      %547 = vmatprep.mubr.bf16.mxu0 0
      %548 = vmatmul.mubr.bf16.gmra.mrb[0].mxu0 %v467
      %v549 = vpop.f32.mrb[0].mxu0
      %v550 = vadd.f32 0.0, %v549
      %v551 = vpop.f32.mrb[0].mxu0
      %v552 = vpop.f32.mrb[0].mxu0
      %v553 = vadd.f32 0.0, %v552
      %v554 = vpop.f32.mrb[0].mxu0
      %555 = vmatprep.mubr.bf16.mxu0 0
      %556 = vmatmul.mubr.bf16.gmra.mrb[0].mxu0 %v470
      %v557 = vpop.f32.mrb[0].mxu0
      %v558 = vadd.f32 0.0, %v557
      %v559 = vpop.f32.mrb[0].mxu0
      %v560 = vpop.f32.mrb[0].mxu0
      %v561 = vadd.f32 0.0, %v560
      %v562 = vpop.f32.mrb[0].mxu0
      %563 = vmatprep.mubr.bf16.mxu0 0
      %564 = vmatmul.mubr.bf16.gmra.mrb[0].mxu0 %v473
      %v565 = vpop.f32.mrb[0].mxu0
      %v566 = vadd.f32 0.0, %v565
      %v567 = vpop.f32.mrb[0].mxu0
      %v568 = vpop.f32.mrb[0].mxu0
      %v569 = vadd.f32 0.0, %v568
      %v570 = vpop.f32.mrb[0].mxu0
      %571 = vdwg.mxu0
      %v572 = vpack.c.bf16 %v513, %v510
      %v573 = vpack.c.bf16 %v521, %v518
      %v574 = vpack.c.bf16 %v529, %v526
      %v575 = vpack.c.bf16 %v537, %v534
      %v576 = vpack.c.bf16 %v545, %v542
      %v577 = vpack.c.bf16 %v553, %v550
      %v578 = vpack.c.bf16 %v561, %v558
      %v579 = vpack.c.bf16 %v569, %v566
      %v580 = vld [vmem:[%s3] sm:$0x1]
      %v582 = vpack.i.b16 %v580, %v580
      %v584 = vlaneseq
      %v585 = vshrl.u32 %v584, 7
      %v586 = vsub.s32 0, %v585
      %v587 = vrot.slane %v582, %v586
      %v588 = vadd.bf16 %v572, %v587
      %v589 = vadd.bf16 %v573, %v587
      %v590 = vadd.bf16 %v574, %v587
      %v591 = vadd.bf16 %v575, %v587
      %v592 = vadd.bf16 %v576, %v587
      %v593 = vadd.bf16 %v577, %v587
      %v594 = vadd.bf16 %v578, %v587
      %v595 = vadd.bf16 %v579, %v587
      %vm596 = vcmp.ge.bf16.partialorder %v588, 0
      %vm597 = vcmp.ge.bf16.partialorder %v589, 0
      %vm598 = vcmp.ge.bf16.partialorder %v590, 0
      %vm599 = vcmp.ge.bf16.partialorder %v591, 0
      %vm600 = vcmp.ge.bf16.partialorder %v592, 0
      %vm601 = vcmp.ge.bf16.partialorder %v593, 0
      %vm602 = vcmp.ge.bf16.partialorder %v594, 0
      %vm603 = vcmp.ge.bf16.partialorder %v595, 0
      %v604 = vmul.bf16 %v588, 1045249613
      %v605 = vmul.bf16 %v589, 1045249613
      %v606 = vmul.bf16 %v590, 1045249613
      %v607 = vmul.bf16 %v591, 1045249613
      %v608 = vmul.bf16 %v592, 1045249613
      %v609 = vmul.bf16 %v593, 1045249613
      %v610 = vmul.bf16 %v594, 1045249613
      %v611 = vmul.bf16 %v595, 1045249613
      %v612 = vsel %vm596, %v588, %v604
      %v613 = vsel %vm597, %v589, %v605
      %v614 = vsel %vm598, %v590, %v606
      %v615 = vsel %vm599, %v591, %v607
      %v616 = vsel %vm600, %v592, %v608
      %v617 = vsel %vm601, %v593, %v609
      %v618 = vsel %vm602, %v594, %v610
      %v619 = vsel %vm603, %v595, %v611
      %v620 = vld [vmem:[%s4] sm:$0xf]
      %v621 = vld [vmem:[%s4 + $0x4] sm:$0xf]
      %v622 = vld [vmem:[%s4 + $0x8] sm:$0xf]
      %v623 = vld [vmem:[%s4 + $0xc] sm:$0xf]
      %v624 = vld [vmem:[%s4 + $0x10] sm:$0xf]
      %v625 = vld [vmem:[%s4 + $0x14] sm:$0xf]
      %v626 = vld [vmem:[%s4 + $0x18] sm:$0xf]
      %v627 = vld [vmem:[%s4 + $0x1c] sm:$0xf]
      %v636 = vunpack.c.l.b16 %v620
      %v637 = vunpack.c.l.b16 %v621
      %v638 = vunpack.c.l.b16 %v622
      %v639 = vunpack.c.l.b16 %v623
      %v640 = vunpack.c.l.b16 %v624
      %v641 = vunpack.c.l.b16 %v625
      %v642 = vunpack.c.l.b16 %v626
      %v643 = vunpack.c.l.b16 %v627
      %v644 = vpack.c.b16 %v637, %v636
      %v645 = vpack.c.b16 %v639, %v638
      %v646 = vpack.c.b16 %v641, %v640
      %v647 = vpack.c.b16 %v643, %v642
      %v653 = vsel %vm450, %v612, 0
      %v656 = vsel %vm450, %v613, 0
      %v659 = vsel %vm450, %v614, 0
      %v662 = vsel %vm450, %v615, 0
      %v665 = vsel %vm450, %v616, 0
      %v668 = vsel %vm450, %v617, 0
      %v671 = vsel %vm450, %v618, 0
      %v674 = vsel %vm450, %v619, 0
      %676 = vmatprep.subr.bf16.mxu0 0
      %677 = vmatpush1.bf16.msra.mxu0 %v644
      %678 = vmatprep.subr.bf16.mxu0 0
      %679 = vmatpush1.bf16.msra.mxu0 %v645
      %680 = vmatprep.subr.bf16.mxu0 0
      %681 = vmatpush1.bf16.msra.mxu0 %v646
      %682 = vmatprep.subr.bf16.mxu0 0
      %683 = vmatpush1.bf16.msra.mxu0 %v647
      %684 = vmatprep.subr.bf16.mxu0 0
      %685 = vmatpush1.bf16.msra.mxu0 0
      %686 = vmatprep.subr.bf16.mxu0 0
      %687 = vmatpush1.bf16.msra.mxu0 0
      %688 = vmatprep.subr.bf16.mxu0 0
      %689 = vmatpush1.bf16.msra.mxu0 0
      %690 = vmatprep.subr.bf16.mxu0 0
      %691 = vmatpush1.bf16.msra.mxu0 0
      %692 = vmatprep.subr.bf16.mxu0 0
      %693 = vmatpush1.bf16.msra.mxu0 0
      %694 = vmatprep.subr.bf16.mxu0 0
      %695 = vmatpush1.bf16.msra.mxu0 0
      %696 = vmatprep.subr.bf16.mxu0 0
      %697 = vmatpush1.bf16.msra.mxu0 0
      %698 = vmatprep.subr.bf16.mxu0 0
      %699 = vmatpush1.bf16.msra.mxu0 0
      %700 = vmatprep.subr.bf16.mxu0 0
      %701 = vmatpush1.bf16.msra.mxu0 0
      %702 = vmatprep.subr.bf16.mxu0 0
      %703 = vmatpush1.bf16.msra.mxu0 0
      %704 = vmatprep.subr.bf16.mxu0 0
      %705 = vmatpush1.bf16.msra.mxu0 0
      %706 = vmatprep.subr.bf16.mxu0 0
      %707 = vmatpush1.bf16.msra.mxu0 0
      %708 = vmatprep.mubr.bf16.mxu0 0
      %709 = vmatmul.mubr.bf16.gmra.mrb[0].mxu0 %v653
      %v710 = vpop.f32.mrb[0].mxu0
      %v711 = vadd.f32 0.0, %v710
      %v712 = vpop.f32.mrb[0].mxu0
      %v713 = vpop.f32.mrb[0].mxu0
      %v714 = vadd.f32 0.0, %v713
      %v715 = vpop.f32.mrb[0].mxu0
      %716 = vmatprep.mubr.bf16.mxu0 0
      %717 = vmatmul.mubr.bf16.gmra.mrb[0].mxu0 %v656
      %v718 = vpop.f32.mrb[0].mxu0
      %v719 = vadd.f32 0.0, %v718
      %v720 = vpop.f32.mrb[0].mxu0
      %v721 = vpop.f32.mrb[0].mxu0
      %v722 = vadd.f32 0.0, %v721
      %v723 = vpop.f32.mrb[0].mxu0
      %724 = vmatprep.mubr.bf16.mxu0 0
      %725 = vmatmul.mubr.bf16.gmra.mrb[0].mxu0 %v659
      %v726 = vpop.f32.mrb[0].mxu0
      %v727 = vadd.f32 0.0, %v726
      %v728 = vpop.f32.mrb[0].mxu0
      %v729 = vpop.f32.mrb[0].mxu0
      %v730 = vadd.f32 0.0, %v729
      %v731 = vpop.f32.mrb[0].mxu0
      %732 = vmatprep.mubr.bf16.mxu0 0
      %733 = vmatmul.mubr.bf16.gmra.mrb[0].mxu0 %v662
      %v734 = vpop.f32.mrb[0].mxu0
      %v735 = vadd.f32 0.0, %v734
      %v736 = vpop.f32.mrb[0].mxu0
      %v737 = vpop.f32.mrb[0].mxu0
      %v738 = vadd.f32 0.0, %v737
      %v739 = vpop.f32.mrb[0].mxu0
      %740 = vmatprep.mubr.bf16.mxu0 0
      %741 = vmatmul.mubr.bf16.gmra.mrb[0].mxu0 %v665
      %v742 = vpop.f32.mrb[0].mxu0
      %v743 = vadd.f32 0.0, %v742
      %v744 = vpop.f32.mrb[0].mxu0
      %v745 = vpop.f32.mrb[0].mxu0
      %v746 = vadd.f32 0.0, %v745
      %v747 = vpop.f32.mrb[0].mxu0
      %748 = vmatprep.mubr.bf16.mxu0 0
      %749 = vmatmul.mubr.bf16.gmra.mrb[0].mxu0 %v668
      %v750 = vpop.f32.mrb[0].mxu0
      %v751 = vadd.f32 0.0, %v750
      %v752 = vpop.f32.mrb[0].mxu0
      %v753 = vpop.f32.mrb[0].mxu0
      %v754 = vadd.f32 0.0, %v753
      %v755 = vpop.f32.mrb[0].mxu0
      %756 = vmatprep.mubr.bf16.mxu0 0
      %757 = vmatmul.mubr.bf16.gmra.mrb[0].mxu0 %v671
      %v758 = vpop.f32.mrb[0].mxu0
      %v759 = vadd.f32 0.0, %v758
      %v760 = vpop.f32.mrb[0].mxu0
      %v761 = vpop.f32.mrb[0].mxu0
      %v762 = vadd.f32 0.0, %v761
      %v763 = vpop.f32.mrb[0].mxu0
      %764 = vmatprep.mubr.bf16.mxu0 0
      %765 = vmatmul.mubr.bf16.gmra.mrb[0].mxu0 %v674
      %v766 = vpop.f32.mrb[0].mxu0
      %v767 = vadd.f32 0.0, %v766
      %v768 = vpop.f32.mrb[0].mxu0
      %v769 = vpop.f32.mrb[0].mxu0
      %v770 = vadd.f32 0.0, %v769
      %v771 = vpop.f32.mrb[0].mxu0
      %772 = vdwg.mxu0
      %v773 = vpack.c.bf16 %v714, %v711
      %v774 = vpack.c.bf16 %v722, %v719
      %v775 = vpack.c.bf16 %v730, %v727
      %v776 = vpack.c.bf16 %v738, %v735
      %v777 = vpack.c.bf16 %v746, %v743
      %v778 = vpack.c.bf16 %v754, %v751
      %v779 = vpack.c.bf16 %v762, %v759
      %v780 = vpack.c.bf16 %v770, %v767
      %v781 = vld [vmem:[%s5] sm:$0x1]
      %v783 = vpack.i.b16 %v781, %v781
      %v785 = vlaneseq
      %v786 = vshrl.u32 %v785, 7
      %v787 = vsub.s32 0, %v786
      %v788 = vrot.slane %v783, %v787
      %v789 = vadd.bf16 %v773, %v788
      %v790 = vadd.bf16 %v774, %v788
      %v791 = vadd.bf16 %v775, %v788
      %v792 = vadd.bf16 %v776, %v788
      %v793 = vadd.bf16 %v777, %v788
      %v794 = vadd.bf16 %v778, %v788
      %v795 = vadd.bf16 %v779, %v788
      %v796 = vadd.bf16 %v780, %v788
      %vm797 = vcmp.ge.bf16.partialorder %v789, 0
      %vm798 = vcmp.ge.bf16.partialorder %v790, 0
      %vm799 = vcmp.ge.bf16.partialorder %v791, 0
      %vm800 = vcmp.ge.bf16.partialorder %v792, 0
      %vm801 = vcmp.ge.bf16.partialorder %v793, 0
      %vm802 = vcmp.ge.bf16.partialorder %v794, 0
      %vm803 = vcmp.ge.bf16.partialorder %v795, 0
      %vm804 = vcmp.ge.bf16.partialorder %v796, 0
      %v805 = vmul.bf16 %v789, 1045249613
      %v806 = vmul.bf16 %v790, 1045249613
      %v807 = vmul.bf16 %v791, 1045249613
      %v808 = vmul.bf16 %v792, 1045249613
      %v809 = vmul.bf16 %v793, 1045249613
      %v810 = vmul.bf16 %v794, 1045249613
      %v811 = vmul.bf16 %v795, 1045249613
      %v812 = vmul.bf16 %v796, 1045249613
      %v813 = vsel %vm797, %v789, %v805
      %v814 = vsel %vm798, %v790, %v806
      %v815 = vsel %vm799, %v791, %v807
      %v816 = vsel %vm800, %v792, %v808
      %v817 = vsel %vm801, %v793, %v809
      %v818 = vsel %vm802, %v794, %v810
      %v819 = vsel %vm803, %v795, %v811
      %v820 = vsel %vm804, %v796, %v812
      %v821 = vld [vmem:[%s6] sm:$0xf]
      %v822 = vld [vmem:[%s6 + $0x4] sm:$0xf]
      %v823 = vld [vmem:[%s6 + $0x8] sm:$0xf]
      %v824 = vld [vmem:[%s6 + $0xc] sm:$0xf]
      %v825 = vld [vmem:[%s6 + $0x10] sm:$0xf]
      %v826 = vld [vmem:[%s6 + $0x14] sm:$0xf]
      %v827 = vld [vmem:[%s6 + $0x18] sm:$0xf]
      %v828 = vld [vmem:[%s6 + $0x1c] sm:$0xf]
      %v837 = vunpack.c.l.b16 %v821
      %v838 = vunpack.c.l.b16 %v822
      %v839 = vunpack.c.l.b16 %v823
      %v840 = vunpack.c.l.b16 %v824
      %v841 = vunpack.c.l.b16 %v825
      %v842 = vunpack.c.l.b16 %v826
      %v843 = vunpack.c.l.b16 %v827
      %v844 = vunpack.c.l.b16 %v828
      %v845 = vpack.c.b16 %v838, %v837
      %v846 = vpack.c.b16 %v840, %v839
      %v847 = vpack.c.b16 %v842, %v841
      %v848 = vpack.c.b16 %v844, %v843
      %v854 = vsel %vm450, %v813, 0
      %v857 = vsel %vm450, %v814, 0
      %v860 = vsel %vm450, %v815, 0
      %v863 = vsel %vm450, %v816, 0
      %v866 = vsel %vm450, %v817, 0
      %v869 = vsel %vm450, %v818, 0
      %v872 = vsel %vm450, %v819, 0
      %v875 = vsel %vm450, %v820, 0
      %877 = vmatprep.subr.bf16.mxu0 0
      %878 = vmatpush1.bf16.msra.mxu0 %v845
      %879 = vmatprep.subr.bf16.mxu0 0
      %880 = vmatpush1.bf16.msra.mxu0 %v846
      %881 = vmatprep.subr.bf16.mxu0 0
      %882 = vmatpush1.bf16.msra.mxu0 %v847
      %883 = vmatprep.subr.bf16.mxu0 0
      %884 = vmatpush1.bf16.msra.mxu0 %v848
      %885 = vmatprep.subr.bf16.mxu0 0
      %886 = vmatpush1.bf16.msra.mxu0 0
      %887 = vmatprep.subr.bf16.mxu0 0
      %888 = vmatpush1.bf16.msra.mxu0 0
      %889 = vmatprep.subr.bf16.mxu0 0
      %890 = vmatpush1.bf16.msra.mxu0 0
      %891 = vmatprep.subr.bf16.mxu0 0
      %892 = vmatpush1.bf16.msra.mxu0 0
      %893 = vmatprep.subr.bf16.mxu0 0
      %894 = vmatpush1.bf16.msra.mxu0 0
      %895 = vmatprep.subr.bf16.mxu0 0
      %896 = vmatpush1.bf16.msra.mxu0 0
      %897 = vmatprep.subr.bf16.mxu0 0
      %898 = vmatpush1.bf16.msra.mxu0 0
      %899 = vmatprep.subr.bf16.mxu0 0
      %900 = vmatpush1.bf16.msra.mxu0 0
      %901 = vmatprep.subr.bf16.mxu0 0
      %902 = vmatpush1.bf16.msra.mxu0 0
      %903 = vmatprep.subr.bf16.mxu0 0
      %904 = vmatpush1.bf16.msra.mxu0 0
      %905 = vmatprep.subr.bf16.mxu0 0
      %906 = vmatpush1.bf16.msra.mxu0 0
      %907 = vmatprep.subr.bf16.mxu0 0
      %908 = vmatpush1.bf16.msra.mxu0 0
      %909 = vmatprep.mubr.bf16.mxu0 0
      %910 = vmatmul.mubr.bf16.gmra.mrb[0].mxu0 %v854
      %v911 = vpop.f32.mrb[0].mxu0
      %v912 = vadd.f32 0.0, %v911
      %v913 = vpop.f32.mrb[0].mxu0
      %v914 = vpop.f32.mrb[0].mxu0
      %v915 = vadd.f32 0.0, %v914
      %v916 = vpop.f32.mrb[0].mxu0
      %917 = vmatprep.mubr.bf16.mxu0 0
      %918 = vmatmul.mubr.bf16.gmra.mrb[0].mxu0 %v857
      %v919 = vpop.f32.mrb[0].mxu0
      %v920 = vadd.f32 0.0, %v919
      %v921 = vpop.f32.mrb[0].mxu0
      %v922 = vpop.f32.mrb[0].mxu0
      %v923 = vadd.f32 0.0, %v922
      %v924 = vpop.f32.mrb[0].mxu0
      %925 = vmatprep.mubr.bf16.mxu0 0
      %926 = vmatmul.mubr.bf16.gmra.mrb[0].mxu0 %v860
      %v927 = vpop.f32.mrb[0].mxu0
      %v928 = vadd.f32 0.0, %v927
      %v929 = vpop.f32.mrb[0].mxu0
      %v930 = vpop.f32.mrb[0].mxu0
      %v931 = vadd.f32 0.0, %v930
      %v932 = vpop.f32.mrb[0].mxu0
      %933 = vmatprep.mubr.bf16.mxu0 0
      %934 = vmatmul.mubr.bf16.gmra.mrb[0].mxu0 %v863
      %v935 = vpop.f32.mrb[0].mxu0
      %v936 = vadd.f32 0.0, %v935
      %v937 = vpop.f32.mrb[0].mxu0
      %v938 = vpop.f32.mrb[0].mxu0
      %v939 = vadd.f32 0.0, %v938
      %v940 = vpop.f32.mrb[0].mxu0
      %941 = vmatprep.mubr.bf16.mxu0 0
      %942 = vmatmul.mubr.bf16.gmra.mrb[0].mxu0 %v866
      %v943 = vpop.f32.mrb[0].mxu0
      %v944 = vadd.f32 0.0, %v943
      %v945 = vpop.f32.mrb[0].mxu0
      %v946 = vpop.f32.mrb[0].mxu0
      %v947 = vadd.f32 0.0, %v946
      %v948 = vpop.f32.mrb[0].mxu0
      %949 = vmatprep.mubr.bf16.mxu0 0
      %950 = vmatmul.mubr.bf16.gmra.mrb[0].mxu0 %v869
      %v951 = vpop.f32.mrb[0].mxu0
      %v952 = vadd.f32 0.0, %v951
      %v953 = vpop.f32.mrb[0].mxu0
      %v954 = vpop.f32.mrb[0].mxu0
      %v955 = vadd.f32 0.0, %v954
      %v956 = vpop.f32.mrb[0].mxu0
      %957 = vmatprep.mubr.bf16.mxu0 0
      %958 = vmatmul.mubr.bf16.gmra.mrb[0].mxu0 %v872
      %v959 = vpop.f32.mrb[0].mxu0
      %v960 = vadd.f32 0.0, %v959
      %v961 = vpop.f32.mrb[0].mxu0
      %v962 = vpop.f32.mrb[0].mxu0
      %v963 = vadd.f32 0.0, %v962
      %v964 = vpop.f32.mrb[0].mxu0
      %965 = vmatprep.mubr.bf16.mxu0 0
      %966 = vmatmul.mubr.bf16.gmra.mrb[0].mxu0 %v875
      %v967 = vpop.f32.mrb[0].mxu0
      %v968 = vadd.f32 0.0, %v967
      %v969 = vpop.f32.mrb[0].mxu0
      %v970 = vpop.f32.mrb[0].mxu0
      %v971 = vadd.f32 0.0, %v970
      %v972 = vpop.f32.mrb[0].mxu0
      %973 = vdwg.mxu0
      %v974 = vpack.c.bf16 %v915, %v912
      %v975 = vpack.c.bf16 %v923, %v920
      %v976 = vpack.c.bf16 %v931, %v928
      %v977 = vpack.c.bf16 %v939, %v936
      %v978 = vpack.c.bf16 %v947, %v944
      %v979 = vpack.c.bf16 %v955, %v952
      %v980 = vpack.c.bf16 %v963, %v960
      %v981 = vpack.c.bf16 %v971, %v968
      %v982 = vld [vmem:[%s7] sm:$0x1]
      %v984 = vpack.i.b16 %v982, %v982
      %v986 = vlaneseq
      %v987 = vshrl.u32 %v986, 7
      %v988 = vsub.s32 0, %v987
      %v989 = vrot.slane %v984, %v988
      %v990 = vadd.bf16 %v974, %v989
      %v991 = vadd.bf16 %v975, %v989
      %v992 = vadd.bf16 %v976, %v989
      %v993 = vadd.bf16 %v977, %v989
      %v994 = vadd.bf16 %v978, %v989
      %v995 = vadd.bf16 %v979, %v989
      %v996 = vadd.bf16 %v980, %v989
      %v997 = vadd.bf16 %v981, %v989
      %vm998 = vcmp.ge.bf16.partialorder %v990, 0
      %vm999 = vcmp.ge.bf16.partialorder %v991, 0
      %vm1000 = vcmp.ge.bf16.partialorder %v992, 0
      %vm1001 = vcmp.ge.bf16.partialorder %v993, 0
      %vm1002 = vcmp.ge.bf16.partialorder %v994, 0
      %vm1003 = vcmp.ge.bf16.partialorder %v995, 0
      %vm1004 = vcmp.ge.bf16.partialorder %v996, 0
      %vm1005 = vcmp.ge.bf16.partialorder %v997, 0
      %v1006 = vmul.bf16 %v990, 1045249613
      %v1007 = vmul.bf16 %v991, 1045249613
      %v1008 = vmul.bf16 %v992, 1045249613
      %v1009 = vmul.bf16 %v993, 1045249613
      %v1010 = vmul.bf16 %v994, 1045249613
      %v1011 = vmul.bf16 %v995, 1045249613
      %v1012 = vmul.bf16 %v996, 1045249613
      %v1013 = vmul.bf16 %v997, 1045249613
      %v1014 = vsel %vm998, %v990, %v1006
      %v1015 = vsel %vm999, %v991, %v1007
      %v1016 = vsel %vm1000, %v992, %v1008
      %v1017 = vsel %vm1001, %v993, %v1009
      %v1018 = vsel %vm1002, %v994, %v1010
      %v1019 = vsel %vm1003, %v995, %v1011
      %v1020 = vsel %vm1004, %v996, %v1012
      %v1021 = vsel %vm1005, %v997, %v1013
      %v1022 = vld [vmem:[%s8] sm:$0xf]
      %v1023 = vld [vmem:[%s8 + $0x4] sm:$0xf]
      %v1024 = vld [vmem:[%s8 + $0x8] sm:$0xf]
      %v1025 = vld [vmem:[%s8 + $0xc] sm:$0xf]
      %v1030 = vunpack.c.l.b16 %v1022
      %v1031 = vunpack.c.l.b16 %v1023
      %v1032 = vunpack.c.l.b16 %v1024
      %v1033 = vunpack.c.l.b16 %v1025
      %v1034 = vpack.c.b16 %v1031, %v1030
      %v1035 = vpack.c.b16 %v1033, %v1032
      %vm1038 = vcmask 261120
      %v1040 = vsel %vm1038, %v1014, 0
      %v1043 = vsel %vm1038, %v1015, 0
      %v1046 = vsel %vm1038, %v1016, 0
      %v1049 = vsel %vm1038, %v1017, 0
      %v1052 = vsel %vm1038, %v1018, 0
      %v1055 = vsel %vm1038, %v1019, 0
      %v1058 = vsel %vm1038, %v1020, 0
      %v1061 = vsel %vm1038, %v1021, 0
      %1063 = vmatprep.subr.bf16.mxu0 0
      %1064 = vmatpush1.bf16.msra.mxu0 %v1034
      %1065 = vmatprep.subr.bf16.mxu0 0
      %1066 = vmatpush1.bf16.msra.mxu0 %v1035
      %1067 = vmatprep.subr.bf16.mxu0 0
      %1068 = vmatpush1.bf16.msra.mxu0 0
      %1069 = vmatprep.subr.bf16.mxu0 0
      %1070 = vmatpush1.bf16.msra.mxu0 0
      %1071 = vmatprep.subr.bf16.mxu0 0
      %1072 = vmatpush1.bf16.msra.mxu0 0
      %1073 = vmatprep.subr.bf16.mxu0 0
      %1074 = vmatpush1.bf16.msra.mxu0 0
      %1075 = vmatprep.subr.bf16.mxu0 0
      %1076 = vmatpush1.bf16.msra.mxu0 0
      %1077 = vmatprep.subr.bf16.mxu0 0
      %1078 = vmatpush1.bf16.msra.mxu0 0
      %1079 = vmatprep.subr.bf16.mxu0 0
      %1080 = vmatpush1.bf16.msra.mxu0 0
      %1081 = vmatprep.subr.bf16.mxu0 0
      %1082 = vmatpush1.bf16.msra.mxu0 0
      %1083 = vmatprep.subr.bf16.mxu0 0
      %1084 = vmatpush1.bf16.msra.mxu0 0
      %1085 = vmatprep.subr.bf16.mxu0 0
      %1086 = vmatpush1.bf16.msra.mxu0 0
      %1087 = vmatprep.subr.bf16.mxu0 0
      %1088 = vmatpush1.bf16.msra.mxu0 0
      %1089 = vmatprep.subr.bf16.mxu0 0
      %1090 = vmatpush1.bf16.msra.mxu0 0
      %1091 = vmatprep.subr.bf16.mxu0 0
      %1092 = vmatpush1.bf16.msra.mxu0 0
      %1093 = vmatprep.subr.bf16.mxu0 0
      %1094 = vmatpush1.bf16.msra.mxu0 0
      %1095 = vmatprep.mubr.bf16.mxu0 0
      %1096 = vmatmul.mubr.bf16.gmra.mrb[0].mxu0 %v1040
      %v1097 = vpop.f32.mrb[0].mxu0
      %v1098 = vadd.f32 0.0, %v1097
      %v1099 = vpop.f32.mrb[0].mxu0
      %v1100 = vpop.f32.mrb[0].mxu0
      %v1101 = vadd.f32 0.0, %v1100
      %v1102 = vpop.f32.mrb[0].mxu0
      %1103 = vmatprep.mubr.bf16.mxu0 0
      %1104 = vmatmul.mubr.bf16.gmra.mrb[0].mxu0 %v1043
      %v1105 = vpop.f32.mrb[0].mxu0
      %v1106 = vadd.f32 0.0, %v1105
      %v1107 = vpop.f32.mrb[0].mxu0
      %v1108 = vpop.f32.mrb[0].mxu0
      %v1109 = vadd.f32 0.0, %v1108
      %v1110 = vpop.f32.mrb[0].mxu0
      %1111 = vmatprep.mubr.bf16.mxu0 0
      %1112 = vmatmul.mubr.bf16.gmra.mrb[0].mxu0 %v1046
      %v1113 = vpop.f32.mrb[0].mxu0
      %v1114 = vadd.f32 0.0, %v1113
      %v1115 = vpop.f32.mrb[0].mxu0
      %v1116 = vpop.f32.mrb[0].mxu0
      %v1117 = vadd.f32 0.0, %v1116
      %v1118 = vpop.f32.mrb[0].mxu0
      %1119 = vmatprep.mubr.bf16.mxu0 0
      %1120 = vmatmul.mubr.bf16.gmra.mrb[0].mxu0 %v1049
      %v1121 = vpop.f32.mrb[0].mxu0
      %v1122 = vadd.f32 0.0, %v1121
      %v1123 = vpop.f32.mrb[0].mxu0
      %v1124 = vpop.f32.mrb[0].mxu0
      %v1125 = vadd.f32 0.0, %v1124
      %v1126 = vpop.f32.mrb[0].mxu0
      %1127 = vmatprep.mubr.bf16.mxu0 0
      %1128 = vmatmul.mubr.bf16.gmra.mrb[0].mxu0 %v1052
      %v1129 = vpop.f32.mrb[0].mxu0
      %v1130 = vadd.f32 0.0, %v1129
      %v1131 = vpop.f32.mrb[0].mxu0
      %v1132 = vpop.f32.mrb[0].mxu0
      %v1133 = vadd.f32 0.0, %v1132
      %v1134 = vpop.f32.mrb[0].mxu0
      %1135 = vmatprep.mubr.bf16.mxu0 0
      %1136 = vmatmul.mubr.bf16.gmra.mrb[0].mxu0 %v1055
      %v1137 = vpop.f32.mrb[0].mxu0
      %v1138 = vadd.f32 0.0, %v1137
      %v1139 = vpop.f32.mrb[0].mxu0
      %v1140 = vpop.f32.mrb[0].mxu0
      %v1141 = vadd.f32 0.0, %v1140
      %v1142 = vpop.f32.mrb[0].mxu0
      %1143 = vmatprep.mubr.bf16.mxu0 0
      %1144 = vmatmul.mubr.bf16.gmra.mrb[0].mxu0 %v1058
      %v1145 = vpop.f32.mrb[0].mxu0
      %v1146 = vadd.f32 0.0, %v1145
      %v1147 = vpop.f32.mrb[0].mxu0
      %v1148 = vpop.f32.mrb[0].mxu0
      %v1149 = vadd.f32 0.0, %v1148
      %v1150 = vpop.f32.mrb[0].mxu0
      %1151 = vmatprep.mubr.bf16.mxu0 0
      %1152 = vmatmul.mubr.bf16.gmra.mrb[0].mxu0 %v1061
      %v1153 = vpop.f32.mrb[0].mxu0
      %v1154 = vadd.f32 0.0, %v1153
      %v1155 = vpop.f32.mrb[0].mxu0
      %v1156 = vpop.f32.mrb[0].mxu0
      %v1157 = vadd.f32 0.0, %v1156
      %v1158 = vpop.f32.mrb[0].mxu0
      %1159 = vdwg.mxu0
      %v1160 = vpack.c.bf16 %v1101, %v1098
      %v1161 = vpack.c.bf16 %v1109, %v1106
      %v1162 = vpack.c.bf16 %v1117, %v1114
      %v1163 = vpack.c.bf16 %v1125, %v1122
      %v1164 = vpack.c.bf16 %v1133, %v1130
      %v1165 = vpack.c.bf16 %v1141, %v1138
      %v1166 = vpack.c.bf16 %v1149, %v1146
      %v1167 = vpack.c.bf16 %v1157, %v1154
      %v1168 = vld [vmem:[%s9] sm:$0x1]
      %v1170 = vpack.i.b16 %v1168, %v1168
      %v1172 = vlaneseq
      %v1173 = vshrl.u32 %v1172, 7
      %v1174 = vsub.s32 0, %v1173
      %v1175 = vrot.slane %v1170, %v1174
      %v1176 = vadd.bf16 %v1160, %v1175
      %v1177 = vadd.bf16 %v1161, %v1175
      %v1178 = vadd.bf16 %v1162, %v1175
      %v1179 = vadd.bf16 %v1163, %v1175
      %v1180 = vadd.bf16 %v1164, %v1175
      %v1181 = vadd.bf16 %v1165, %v1175
      %v1182 = vadd.bf16 %v1166, %v1175
      %v1183 = vadd.bf16 %v1167, %v1175
      %vm1184 = vcmp.ge.bf16.partialorder %v1176, 0
      %vm1185 = vcmp.ge.bf16.partialorder %v1177, 0
      %vm1186 = vcmp.ge.bf16.partialorder %v1178, 0
      %vm1187 = vcmp.ge.bf16.partialorder %v1179, 0
      %vm1188 = vcmp.ge.bf16.partialorder %v1180, 0
      %vm1189 = vcmp.ge.bf16.partialorder %v1181, 0
      %vm1190 = vcmp.ge.bf16.partialorder %v1182, 0
      %vm1191 = vcmp.ge.bf16.partialorder %v1183, 0
      %v1192 = vmul.bf16 %v1176, 1045249613
      %v1193 = vmul.bf16 %v1177, 1045249613
      %v1194 = vmul.bf16 %v1178, 1045249613
      %v1195 = vmul.bf16 %v1179, 1045249613
      %v1196 = vmul.bf16 %v1180, 1045249613
      %v1197 = vmul.bf16 %v1181, 1045249613
      %v1198 = vmul.bf16 %v1182, 1045249613
      %v1199 = vmul.bf16 %v1183, 1045249613
      %v1200 = vsel %vm1184, %v1176, %v1192
      %v1201 = vsel %vm1185, %v1177, %v1193
      %v1202 = vsel %vm1186, %v1178, %v1194
      %v1203 = vsel %vm1187, %v1179, %v1195
      %v1204 = vsel %vm1188, %v1180, %v1196
      %v1205 = vsel %vm1189, %v1181, %v1197
      %v1206 = vsel %vm1190, %v1182, %v1198
      %v1207 = vsel %vm1191, %v1183, %v1199
      %v1208 = vld [vmem:[%s10] sm:$0xf]
      %v1209 = vld [vmem:[%s10 + $0x4] sm:$0xf]
      %v1210 = vld [vmem:[%s10 + $0x8] sm:$0xf]
      %v1211 = vld [vmem:[%s10 + $0xc] sm:$0xf]
      %v1212 = vld [vmem:[%s11] sm:$0x1]
      %v1214 = vlaneseq
      %v1215 = vshrl.u32 %v1214, 7
      %v1216 = vsub.s32 0, %v1215
      %v1217 = vrot.slane %v1212, %v1216
      %v1223 = vunpack.c.l.b16 %v1208
      %v1224 = vunpack.c.l.b16 %v1209
      %v1225 = vunpack.c.l.b16 %v1210
      %v1226 = vunpack.c.l.b16 %v1211
      %v1227 = vpack.c.b16 %v1224, %v1223
      %v1228 = vpack.c.b16 %v1226, %v1225
      %v1232 = vsel %vm1038, %v1200, 0
      %v1235 = vsel %vm1038, %v1201, 0
      %v1238 = vsel %vm1038, %v1202, 0
      %v1241 = vsel %vm1038, %v1203, 0
      %v1244 = vsel %vm1038, %v1204, 0
      %v1247 = vsel %vm1038, %v1205, 0
      %v1250 = vsel %vm1038, %v1206, 0
      %v1253 = vsel %vm1038, %v1207, 0
      %1255 = vmatprep.subr.bf16.mxu0 0
      %1256 = vmatpush1.bf16.msra.mxu0 %v1227
      %1257 = vmatprep.subr.bf16.mxu0 0
      %1258 = vmatpush1.bf16.msra.mxu0 %v1228
      %1259 = vmatprep.subr.bf16.mxu0 0
      %1260 = vmatpush1.bf16.msra.mxu0 0
      %1261 = vmatprep.subr.bf16.mxu0 0
      %1262 = vmatpush1.bf16.msra.mxu0 0
      %1263 = vmatprep.subr.bf16.mxu0 0
      %1264 = vmatpush1.bf16.msra.mxu0 0
      %1265 = vmatprep.subr.bf16.mxu0 0
      %1266 = vmatpush1.bf16.msra.mxu0 0
      %1267 = vmatprep.subr.bf16.mxu0 0
      %1268 = vmatpush1.bf16.msra.mxu0 0
      %1269 = vmatprep.subr.bf16.mxu0 0
      %1270 = vmatpush1.bf16.msra.mxu0 0
      %1271 = vmatprep.subr.bf16.mxu0 0
      %1272 = vmatpush1.bf16.msra.mxu0 0
      %1273 = vmatprep.subr.bf16.mxu0 0
      %1274 = vmatpush1.bf16.msra.mxu0 0
      %1275 = vmatprep.subr.bf16.mxu0 0
      %1276 = vmatpush1.bf16.msra.mxu0 0
      %1277 = vmatprep.subr.bf16.mxu0 0
      %1278 = vmatpush1.bf16.msra.mxu0 0
      %1279 = vmatprep.subr.bf16.mxu0 0
      %1280 = vmatpush1.bf16.msra.mxu0 0
      %1281 = vmatprep.subr.bf16.mxu0 0
      %1282 = vmatpush1.bf16.msra.mxu0 0
      %1283 = vmatprep.subr.bf16.mxu0 0
      %1284 = vmatpush1.bf16.msra.mxu0 0
      %1285 = vmatprep.subr.bf16.mxu0 0
      %1286 = vmatpush1.bf16.msra.mxu0 0
      %1287 = vmatprep.mubr.bf16.mxu0 0
      %1288 = vmatmul.mubr.bf16.gmra.mrb[0].mxu0 %v1232
      %v1289 = vpop.f32.mrb[0].mxu0
      %v1290 = vadd.f32 %v1217, %v1289
      %v1291 = vpop.f32.mrb[0].mxu0
      %v1292 = vpop.f32.mrb[0].mxu0
      %v1293 = vadd.f32 %v1217, %v1292
      %v1294 = vpop.f32.mrb[0].mxu0
      %1295 = vmatprep.mubr.bf16.mxu0 0
      %1296 = vmatmul.mubr.bf16.gmra.mrb[0].mxu0 %v1235
      %v1297 = vpop.f32.mrb[0].mxu0
      %v1298 = vadd.f32 %v1217, %v1297
      %v1299 = vpop.f32.mrb[0].mxu0
      %v1300 = vpop.f32.mrb[0].mxu0
      %v1301 = vadd.f32 %v1217, %v1300
      %v1302 = vpop.f32.mrb[0].mxu0
      %1303 = vmatprep.mubr.bf16.mxu0 0
      %1304 = vmatmul.mubr.bf16.gmra.mrb[0].mxu0 %v1238
      %v1305 = vpop.f32.mrb[0].mxu0
      %v1306 = vadd.f32 %v1217, %v1305
      %v1307 = vpop.f32.mrb[0].mxu0
      %v1308 = vpop.f32.mrb[0].mxu0
      %v1309 = vadd.f32 %v1217, %v1308
      %v1310 = vpop.f32.mrb[0].mxu0
      %1311 = vmatprep.mubr.bf16.mxu0 0
      %1312 = vmatmul.mubr.bf16.gmra.mrb[0].mxu0 %v1241
      %v1313 = vpop.f32.mrb[0].mxu0
      %v1314 = vadd.f32 %v1217, %v1313
      %v1315 = vpop.f32.mrb[0].mxu0
      %v1316 = vpop.f32.mrb[0].mxu0
      %v1317 = vadd.f32 %v1217, %v1316
      %v1318 = vpop.f32.mrb[0].mxu0
      %1319 = vmatprep.mubr.bf16.mxu0 0
      %1320 = vmatmul.mubr.bf16.gmra.mrb[0].mxu0 %v1244
      %v1321 = vpop.f32.mrb[0].mxu0
      %v1322 = vadd.f32 %v1217, %v1321
      %v1323 = vpop.f32.mrb[0].mxu0
      %v1324 = vpop.f32.mrb[0].mxu0
      %v1325 = vadd.f32 %v1217, %v1324
      %v1326 = vpop.f32.mrb[0].mxu0
      %1327 = vmatprep.mubr.bf16.mxu0 0
      %1328 = vmatmul.mubr.bf16.gmra.mrb[0].mxu0 %v1247
      %v1329 = vpop.f32.mrb[0].mxu0
      %v1330 = vadd.f32 %v1217, %v1329
      %v1331 = vpop.f32.mrb[0].mxu0
      %v1332 = vpop.f32.mrb[0].mxu0
      %v1333 = vadd.f32 %v1217, %v1332
      %v1334 = vpop.f32.mrb[0].mxu0
      %1335 = vmatprep.mubr.bf16.mxu0 0
      %1336 = vmatmul.mubr.bf16.gmra.mrb[0].mxu0 %v1250
      %v1337 = vpop.f32.mrb[0].mxu0
      %v1338 = vadd.f32 %v1217, %v1337
      %v1339 = vpop.f32.mrb[0].mxu0
      %v1340 = vpop.f32.mrb[0].mxu0
      %v1341 = vadd.f32 %v1217, %v1340
      %v1342 = vpop.f32.mrb[0].mxu0
      %1343 = vmatprep.mubr.bf16.mxu0 0
      %1344 = vmatmul.mubr.bf16.gmra.mrb[0].mxu0 %v1253
      %v1345 = vpop.f32.mrb[0].mxu0
      %v1346 = vadd.f32 %v1217, %v1345
      %v1347 = vpop.f32.mrb[0].mxu0
      %v1348 = vpop.f32.mrb[0].mxu0
      %v1349 = vadd.f32 %v1217, %v1348
      %v1350 = vpop.f32.mrb[0].mxu0
      %1351 = vdwg.mxu0
      %v1352 = vmax.f32 %v1290, 0.0
      %v1353 = vmax.f32 %v1293, 0.0
      %v1354 = vmax.f32 %v1298, 0.0
      %v1355 = vmax.f32 %v1301, 0.0
      %v1356 = vmax.f32 %v1306, 0.0
      %v1357 = vmax.f32 %v1309, 0.0
      %v1358 = vmax.f32 %v1314, 0.0
      %v1359 = vmax.f32 %v1317, 0.0
      %v1360 = vmax.f32 %v1322, 0.0
      %v1361 = vmax.f32 %v1325, 0.0
      %v1362 = vmax.f32 %v1330, 0.0
      %v1363 = vmax.f32 %v1333, 0.0
      %v1364 = vmax.f32 %v1338, 0.0
      %v1365 = vmax.f32 %v1341, 0.0
      %v1366 = vmax.f32 %v1346, 0.0
      %v1367 = vmax.f32 %v1349, 0.0
      %vm1368 = vcmask 130048
      %1369 = vst.msk [vmem:[%s390] sm:$0xff] %vm1368, %v1352
      %1370 = vst.msk [vmem:[%s390 + $0x8] sm:$0xff] %vm1368, %v1353
      %1371 = vst.msk [vmem:[%s390 + $0x10] sm:$0xff] %vm1368, %v1354
      %1372 = vst.msk [vmem:[%s390 + $0x18] sm:$0xff] %vm1368, %v1355
      %1373 = vst.msk [vmem:[%s390 + $0x20] sm:$0xff] %vm1368, %v1356
      %1374 = vst.msk [vmem:[%s390 + $0x28] sm:$0xff] %vm1368, %v1357
      %1375 = vst.msk [vmem:[%s390 + $0x30] sm:$0xff] %vm1368, %v1358
      %1376 = vst.msk [vmem:[%s390 + $0x38] sm:$0xff] %vm1368, %v1359
      %1377 = vst.msk [vmem:[%s390 + $0x40] sm:$0xff] %vm1368, %v1360
      %1378 = vst.msk [vmem:[%s390 + $0x48] sm:$0xff] %vm1368, %v1361
      %1379 = vst.msk [vmem:[%s390 + $0x50] sm:$0xff] %vm1368, %v1362
      %1380 = vst.msk [vmem:[%s390 + $0x58] sm:$0xff] %vm1368, %v1363
      %1381 = vst.msk [vmem:[%s390 + $0x60] sm:$0xff] %vm1368, %v1364
      %1382 = vst.msk [vmem:[%s390 + $0x68] sm:$0xff] %vm1368, %v1365
      %1383 = vst.msk [vmem:[%s390 + $0x70] sm:$0xff] %vm1368, %v1366
      %1384 = vst.msk [vmem:[%s390 + $0x78] sm:$0xff] %vm1368, %v1367
      %s1385 = smul.u32 16, %s24
      %p1386 = scmp.lt.s32.totalorder %s1385, 31
      %s1387 = scalar_select %p1386, %s1385, 31
      %s1388 = smul.addr %s1387, 8
      %s1389 = scalar_lea.vmem %s12, %s1388
      // Predicated region
      $region65: #{tpu_custom_call.1} parent=63 // pred_check
        %p1390 = pneg %p278
      $region66: #{tpu_custom_call.1} parent=63 // pred_check_branch
        %1392 = sbr.rel (%p1390) target = $region68
      $region67: #{tpu_custom_call.1} parent=63 // pred_region
        %s1393 = smul.u32 16, %s24
      $region68: #{tpu_custom_call.1} parent=63 // pred_fallthru
        _
    $region64: #{tpu_custom_call.1} parent=5 // pred_fallthru
      _
    %p1394 = scmp.le.s32.totalorder 2, %s19
    // Predicated region
    $region69: #{tpu_custom_call.1} parent=5 // pred_check
      %p1395 = pneg %p1394
    $region70: #{tpu_custom_call.1} parent=5 // pred_check_branch
      %1397 = sbr.rel (%p1395) target = $region72
    $region71: #{tpu_custom_call.1} parent=5 // pred_region
      %s1398 = ssub.s32 %s19, 2
      // Predicated region
      $region73: #{tpu_custom_call.1} parent=71 // pred_check
        %p1399 = pneg %p284
      $region74: #{tpu_custom_call.1} parent=71 // pred_check_branch
        %1401 = sbr.rel (%p1399) target = $region76
      $region75: #{tpu_custom_call.1} parent=71 // pred_region
        %s1402 = smul.u32 16, %s25
        %p1403 = scmp.lt.s32.totalorder %s1402, 31
        %s1404 = scalar_select %p1403, %s1402, 31
        %s1405 = smul.addr %s1404, 8
        %s1406 = scalar_lea.vmem %s12, %s1405
      $region76: #{tpu_custom_call.1} parent=71 // pred_fallthru
        _
    $region72: #{tpu_custom_call.1} parent=5 // pred_fallthru
      _
  $region6: #{tpu_custom_call.1} parent=0 // loop_footer
    %s23 = sadd.s32 1, %s19
  $region7: #{tpu_custom_call.1} parent=0 // loop_footer_branch
    %18 = sbr.rel target = $region3
  $region8: #{tpu_custom_call.1} parent=0 // loop_exit
    _

</llo_original>
